<compile_context>
chip_gen: v7x
topology: tpu7x:2x2x1
jax: 0.10.0
libtpu: 0.0.40
codegen_flags: <defaults>
</compile_context>

<pallas_src>
import numpy as np
import jax
import jax.numpy as jnp
from jax import lax
from jax.experimental import pallas as pl
from jax.experimental.pallas import tpu as pltpu

EPS = 1e-5


# ---------------------------------------------------------------------------
# Host-side weight preparation (tiny, done once per call)
# ---------------------------------------------------------------------------
def _make_banded_weight(w, W):
    """w: (3, 3, Ci, Co) HWIO 3x3 conv weights ->
    (3, W*Ci, W*Co): for each dy tap, a block-tridiagonal matrix so that a whole image row
    (W pixels x Ci channels flattened on the lane axis) times this matrix performs the dx
    taps + channel mixing with zero padding in W encoded by the band."""
    _, _, Ci, Co = w.shape
    w_in = jnp.arange(W)[:, None]
    w_out = jnp.arange(W)[None, :]
    d = w_in - w_out + 1                              # dx tap index, valid in [0, 3)
    valid = ((d >= 0) & (d <= 2)).astype(w.dtype)
    d_c = jnp.clip(d, 0, 2)
    t = w[:, d_c, :, :]                               # (3, W_in, W_out, Ci, Co)
    t = t * valid[None, :, :, None, None]
    t = jnp.transpose(t, (0, 1, 3, 2, 4))             # (3, W_in, Ci, W_out, Co)
    return t.reshape(3, W * Ci, W * Co)


def _make_diag_weight(ws, W):
    """ws: (1, 1, Ci, Co) 1x1 conv -> (W*Ci, W*Co) block-diagonal matrix."""
    Ci, Co = ws.shape[2], ws.shape[3]
    eye = jnp.eye(W, dtype=ws.dtype)
    m = eye[:, None, :, None] * ws[0, 0][None, :, None, :]   # (W, Ci, W, Co)
    return m.reshape(W * Ci, W * Co)


# ---------------------------------------------------------------------------
# Kernel
# ---------------------------------------------------------------------------
def residual_block_kernel(xh_ref, wb1_ref, wb2_ref, sel_ref, selt_ref, bn_ref,
                          o_ref, mid_ref):
    N, Hp, WCin = xh_ref.shape
    H = Hp - 2
    R, L = o_ref.shape                       # R = N*H, L = W*Cout (lane-dense, 128)
    Cout = sel_ref.shape[1]
    inv_n = 1.0 / float(R * (L // Cout))     # 1 / (N*H*W)

    sel = sel_ref[...]                       # (L, Cout) 0/1 channel selector
    selt = selt_ref[...]                     # (Cout, L)

    def bn_affine(y, gamma_c, beta_c):
        """Training-mode BN (biased variance, eps=1e-5), fused to one multiply-add."""
        s1 = jnp.sum(y, axis=0, keepdims=True)                 # (1, L) per-(w,c) sums
        s2 = jnp.sum(y * y, axis=0, keepdims=True)
        mean_c = jnp.dot(s1, sel, preferred_element_type=jnp.float32) * inv_n   # (1, C)
        ex2_c = jnp.dot(s2, sel, preferred_element_type=jnp.float32) * inv_n
        var_c = ex2_c - mean_c * mean_c
        scale_c = lax.rsqrt(var_c + EPS) * gamma_c
        shift_c = beta_c - mean_c * scale_c
        scale = jnp.dot(scale_c, selt, preferred_element_type=jnp.float32)      # (1, L)
        shift = jnp.dot(shift_c, selt, preferred_element_type=jnp.float32)
        return y * scale + shift

    # ---- conv1 (3x3, pad=1) + folded 1x1 shortcut: 3 banded bf16 matmuls ----
    acc1 = None
    for dy in range(3):
        a = xh_ref[:, dy:dy + H, :].reshape(R, WCin)           # (R, W*Cin) bf16
        p = jnp.dot(a, wb1_ref[dy], preferred_element_type=jnp.float32)   # (R, 2L) f32
        acc1 = p if acc1 is None else acc1 + p
    c1 = acc1[:, :L]                                           # conv1 output
    sc = acc1[:, L:]                                           # shortcut conv output

    # ---- BN1 (batch stats) + ReLU ----
    y1 = jnp.maximum(bn_affine(c1, bn_ref[0:1, :], bn_ref[1:2, :]), 0.0)

    # ---- H-pad y1 into a small lane-dense scratch for conv2 (zero border rows only) ----
    zrow = jnp.zeros((N, 1, L), jnp.float32)
    mid_ref[:, 0:1, :] = zrow
    mid_ref[:, H + 1:H + 2, :] = zrow
    mid_ref[:, 1:H + 1, :] = y1.reshape(N, H, L)

    # ---- conv2 (3x3, pad=1): 3 banded bf16 matmuls ----
    acc2 = None
    for dy in range(3):
        a = mid_ref[:, dy:dy + H, :].reshape(R, L).astype(jnp.bfloat16)
        p = jnp.dot(a, wb2_ref[dy], preferred_element_type=jnp.float32)
        acc2 = p if acc2 is None else acc2 + p

    # ---- BN2, shortcut BN, residual add, final ReLU (lane-dense unmasked store) ----
    y2 = bn_affine(acc2, bn_ref[2:3, :], bn_ref[3:4, :])
    ys = bn_affine(sc, bn_ref[4:5, :], bn_ref[5:6, :])
    o_ref[...] = jnp.maximum(y2 + ys, 0.0)


# ---------------------------------------------------------------------------
# Wrapper
# ---------------------------------------------------------------------------
def residual_block(x, w1, w2, ws, g1, b1, g2, b2, gs, bs):
    """x: (N, H, W, Cin) f32.  w1:(3,3,Cin,Cout) w2:(3,3,Cout,Cout) ws:(1,1,Cin,Cout) HWIO."""
    N, H, W, Cin = x.shape
    Cout = w1.shape[-1]
    R = N * H
    L = W * Cout

    # Pad in H only (W padding is encoded in the banded weight matrices); bf16 matmul operand.
    xh = jnp.pad(x, ((0, 0), (1, 1), (0, 0), (0, 0)))
    xh = xh.reshape(N, H + 2, W * Cin).astype(jnp.bfloat16)

    wb1c = _make_banded_weight(w1, W)                                     # (3, W*Cin, L)
    sdiag = _make_diag_weight(ws, W)                                      # (W*Cin, L)
    sstack = jnp.stack([jnp.zeros_like(sdiag), sdiag, jnp.zeros_like(sdiag)], axis=0)
    wb1 = jnp.concatenate([wb1c, sstack], axis=-1).astype(jnp.bfloat16)   # (3, W*Cin, 2L)
    wb2 = _make_banded_weight(w2, W).astype(jnp.bfloat16)                 # (3, L, L)

    sel = jnp.tile(jnp.eye(Cout, dtype=jnp.float32), (W, 1))              # (L, Cout)
    selt = sel.T                                                          # (Cout, L)
    bnp = jnp.stack([g1, b1, g2, b2, gs, bs], axis=0).astype(jnp.float32)  # (6, Cout)

    def full(shape):
        return pl.BlockSpec(shape, lambda i, _n=len(shape): (0,) * _n)

    out2d = pl.pallas_call(
        residual_block_kernel,
        out_shape=jax.ShapeDtypeStruct((R, L), jnp.float32),
        grid=(1,),
        in_specs=[full(xh.shape), full(wb1.shape), full(wb2.shape),
                  full(sel.shape), full(selt.shape), full(bnp.shape)],
        out_specs=full((R, L)),
        scratch_shapes=[pltpu.VMEM((N, H + 2, L), jnp.float32)],  # H-padded BN1+ReLU output
        compiler_params=pltpu.CompilerParams(dimension_semantics=("arbitrary",)),
    )(xh, wb1, wb2, sel, selt, bnp)

    # (N*H, W*Cout) -> (N, H, W, Cout): contiguous, layout-free reshape.
    return out2d.reshape(N, H, W, Cout)


# ---------------------------------------------------------------------------
# Pure-JAX reference of the same training-mode forward pass (NHWC)
# ---------------------------------------------------------------------------
def reference(x, w1, w2, ws, g1, b1, g2, b2, gs, bs):
    def conv(h, w, pad):
        return lax.conv_general_dilated(
            h, w, (1, 1), ((pad, pad), (pad, pad)),
            dimension_numbers=("NHWC", "HWIO", "NHWC"),
            precision=lax.Precision.HIGHEST)

    def bn(y, g, b):
        mu = jnp.mean(y, axis=(0, 1, 2), keepdims=True)
        var = jnp.mean((y - mu) ** 2, axis=(0, 1, 2), keepdims=True)
        return (y - mu) * lax.rsqrt(var + EPS) * g + b

    h = jax.nn.relu(bn(conv(x, w1, 1), g1, b1))
    h = bn(conv(h, w2, 1), g2, b2)
    s = bn(conv(x, ws, 0), gs, bs)
    return jax.nn.relu(h + s)


if __name__ == "__main__":
    N, Cin, Cout, H, W = 2, 4, 8, 16, 16
    key = jax.random.PRNGKey(0)
    ks = jax.random.split(key, 10)

    w1 = jax.random.normal(ks[0], (3, 3, Cin, Cout), jnp.float32) * (2.0 / (9 * Cin)) ** 0.5
    w2 = jax.random.normal(ks[1], (3, 3, Cout, Cout), jnp.float32) * (2.0 / (9 * Cout)) ** 0.5
    ws = jax.random.normal(ks[2], (1, 1, Cin, Cout), jnp.float32) * (2.0 / Cin) ** 0.5
    g1 = 1.0 + 0.1 * jax.random.normal(ks[3], (Cout,), jnp.float32)
    b1 = 0.1 * jax.random.normal(ks[4], (Cout,), jnp.float32)
    g2 = 1.0 + 0.1 * jax.random.normal(ks[5], (Cout,), jnp.float32)
    b2 = 0.1 * jax.random.normal(ks[6], (Cout,), jnp.float32)
    gs = 1.0 + 0.1 * jax.random.normal(ks[7], (Cout,), jnp.float32)
    bs = 0.1 * jax.random.normal(ks[8], (Cout,), jnp.float32)

    x = jax.random.normal(ks[9], (N, H, W, Cin), jnp.float32)   # NHWC (== NCHW [2,4,16,16])

    out = jax.block_until_ready(
        residual_block(x, w1, w2, ws, g1, b1, g2, b2, gs, bs))
    ref = jax.block_until_ready(
        reference(x, w1, w2, ws, g1, b1, g2, b2, gs, bs))

    np.testing.assert_allclose(np.asarray(out), np.asarray(ref), rtol=5e-2, atol=5e-2)
    print("KERNEL_OK")
</pallas_src>

<mosaic_0001>
module attributes {stable_mosaic.version = 11 : i64} {
  func.func @residual_block_kernel(%arg0: i32, %arg1: memref<2x18x64xbf16, #tpu.memory_space<vmem>>, %arg2: memref<3x64x256xbf16, #tpu.memory_space<vmem>>, %arg3: memref<3x128x128xbf16, #tpu.memory_space<vmem>>, %arg4: memref<128x8xf32, #tpu.memory_space<vmem>>, %arg5: memref<8x128xf32, #tpu.memory_space<vmem>>, %arg6: memref<6x8xf32, #tpu.memory_space<vmem>>, %arg7: memref<32x128xf32, #tpu.memory_space<vmem>>, %arg8: memref<2x18x128xf32, #tpu.memory_space<vmem>>) attributes {dimension_semantics = [#tpu.dimension_semantics<arbitrary>], iteration_bounds = array<i64: 1>, scalar_prefetch = 0 : i64, scratch_operands = 1 : i64, tpu.core_type = #tpu.core_type<tc>, window_params = [{pipeline_mode = #tpu.pipeline_mode<synchronous>, transform_indices = @transform_0, window_bounds = array<i64: 2, 18, 64>}, {pipeline_mode = #tpu.pipeline_mode<synchronous>, transform_indices = @transform_1, window_bounds = array<i64: 3, 64, 256>}, {pipeline_mode = #tpu.pipeline_mode<synchronous>, transform_indices = @transform_2, window_bounds = array<i64: 3, 128, 128>}, {pipeline_mode = #tpu.pipeline_mode<synchronous>, transform_indices = @transform_3, window_bounds = array<i64: 128, 8>}, {pipeline_mode = #tpu.pipeline_mode<synchronous>, transform_indices = @transform_4, window_bounds = array<i64: 8, 128>}, {pipeline_mode = #tpu.pipeline_mode<synchronous>, transform_indices = @transform_5, window_bounds = array<i64: 6, 8>}, {pipeline_mode = #tpu.pipeline_mode<synchronous>, transform_indices = @transform_6, window_bounds = array<i64: 32, 128>}]} {
    %c0 = arith.constant 0 : index
    %c0_0 = arith.constant 0 : index
    %0 = vector.load %arg4[%c0, %c0_0] : memref<128x8xf32, #tpu.memory_space<vmem>>, vector<128x8xf32>
    %c0_1 = arith.constant 0 : index
    %c0_2 = arith.constant 0 : index
    %1 = vector.load %arg5[%c0_1, %c0_2] : memref<8x128xf32, #tpu.memory_space<vmem>>, vector<8x128xf32>
    %c0_3 = arith.constant 0 : index
    %c0_4 = arith.constant 0 : index
    %c0_5 = arith.constant 0 : index
    %2 = vector.load %arg1[%c0_3, %c0_4, %c0_5] : memref<2x18x64xbf16, #tpu.memory_space<vmem>>, vector<2x16x64xbf16>
    %3 = vector.shape_cast %2 : vector<2x16x64xbf16> to vector<32x64xbf16>
    %c0_6 = arith.constant 0 : index
    %c0_7 = arith.constant 0 : index
    %c0_8 = arith.constant 0 : index
    %4 = vector.load %arg2[%c0_6, %c0_7, %c0_8] : memref<3x64x256xbf16, #tpu.memory_space<vmem>>, vector<1x64x256xbf16>
    %5 = vector.shape_cast %4 : vector<1x64x256xbf16> to vector<64x256xbf16>
    %cst = arith.constant dense<0.000000e+00> : vector<32x256xf32>
    %6 = tpu.matmul %3, %5, %cst {dimension_numbers = #tpu.dot_dimension_numbers<[1], [0], [0], [1], [0, 0, 1, 1], [], []>} : vector<32x64xbf16>, vector<64x256xbf16>, vector<32x256xf32> -> vector<32x256xf32>
    %c0_9 = arith.constant 0 : index
    %c1 = arith.constant 1 : index
    %c0_10 = arith.constant 0 : index
    %7 = vector.load %arg1[%c0_9, %c1, %c0_10] : memref<2x18x64xbf16, #tpu.memory_space<vmem>>, vector<2x16x64xbf16>
    %8 = vector.shape_cast %7 : vector<2x16x64xbf16> to vector<32x64xbf16>
    %c1_11 = arith.constant 1 : index
    %c0_12 = arith.constant 0 : index
    %c0_13 = arith.constant 0 : index
    %9 = vector.load %arg2[%c1_11, %c0_12, %c0_13] : memref<3x64x256xbf16, #tpu.memory_space<vmem>>, vector<1x64x256xbf16>
    %10 = vector.shape_cast %9 : vector<1x64x256xbf16> to vector<64x256xbf16>
    %cst_14 = arith.constant dense<0.000000e+00> : vector<32x256xf32>
    %11 = tpu.matmul %8, %10, %cst_14 {dimension_numbers = #tpu.dot_dimension_numbers<[1], [0], [0], [1], [0, 0, 1, 1], [], []>} : vector<32x64xbf16>, vector<64x256xbf16>, vector<32x256xf32> -> vector<32x256xf32>
    %12 = arith.addf %6, %11 : vector<32x256xf32>
    %c0_15 = arith.constant 0 : index
    %c2 = arith.constant 2 : index
    %c0_16 = arith.constant 0 : index
    %13 = vector.load %arg1[%c0_15, %c2, %c0_16] : memref<2x18x64xbf16, #tpu.memory_space<vmem>>, vector<2x16x64xbf16>
    %14 = vector.shape_cast %13 : vector<2x16x64xbf16> to vector<32x64xbf16>
    %c2_17 = arith.constant 2 : index
    %c0_18 = arith.constant 0 : index
    %c0_19 = arith.constant 0 : index
    %15 = vector.load %arg2[%c2_17, %c0_18, %c0_19] : memref<3x64x256xbf16, #tpu.memory_space<vmem>>, vector<1x64x256xbf16>
    %16 = vector.shape_cast %15 : vector<1x64x256xbf16> to vector<64x256xbf16>
    %cst_20 = arith.constant dense<0.000000e+00> : vector<32x256xf32>
    %17 = tpu.matmul %14, %16, %cst_20 {dimension_numbers = #tpu.dot_dimension_numbers<[1], [0], [0], [1], [0, 0, 1, 1], [], []>} : vector<32x64xbf16>, vector<64x256xbf16>, vector<32x256xf32> -> vector<32x256xf32>
    %18 = arith.addf %12, %17 : vector<32x256xf32>
    %19 = vector.extract_strided_slice %18 {offsets = [0, 0], sizes = [32, 128], strides = [1, 1]} : vector<32x256xf32> to vector<32x128xf32>
    %20 = vector.extract_strided_slice %18 {offsets = [0, 128], sizes = [32, 128], strides = [1, 1]} : vector<32x256xf32> to vector<32x128xf32>
    %c0_21 = arith.constant 0 : index
    %c0_22 = arith.constant 0 : index
    %21 = vector.load %arg6[%c0_21, %c0_22] : memref<6x8xf32, #tpu.memory_space<vmem>>, vector<1x8xf32>
    %c1_23 = arith.constant 1 : index
    %c0_24 = arith.constant 0 : index
    %22 = vector.load %arg6[%c1_23, %c0_24] : memref<6x8xf32, #tpu.memory_space<vmem>>, vector<1x8xf32>
    %cst_25 = arith.constant dense<0.000000e+00> : vector<128xf32>
    %23 = vector.multi_reduction <add>, %19, %cst_25 [0] : vector<32x128xf32> to vector<128xf32>
    %24 = vector.shape_cast %23 : vector<128xf32> to vector<1x128xf32>
    %25 = arith.mulf %19, %19 : vector<32x128xf32>
    %cst_26 = arith.constant dense<0.000000e+00> : vector<128xf32>
    %26 = vector.multi_reduction <add>, %25, %cst_26 [0] : vector<32x128xf32> to vector<128xf32>
    %27 = vector.shape_cast %26 : vector<128xf32> to vector<1x128xf32>
    %cst_27 = arith.constant dense<0.000000e+00> : vector<1x8xf32>
    %28 = tpu.matmul %24, %0, %cst_27 {dimension_numbers = #tpu.dot_dimension_numbers<[1], [0], [0], [1], [0, 0, 1, 1], [], []>} : vector<1x128xf32>, vector<128x8xf32>, vector<1x8xf32> -> vector<1x8xf32>
    %cst_28 = arith.constant 0.001953125 : f32
    %29 = vector.broadcast %cst_28 : f32 to vector<1x8xf32>
    %30 = arith.mulf %28, %29 : vector<1x8xf32>
    %cst_29 = arith.constant dense<0.000000e+00> : vector<1x8xf32>
    %31 = tpu.matmul %27, %0, %cst_29 {dimension_numbers = #tpu.dot_dimension_numbers<[1], [0], [0], [1], [0, 0, 1, 1], [], []>} : vector<1x128xf32>, vector<128x8xf32>, vector<1x8xf32> -> vector<1x8xf32>
    %cst_30 = arith.constant 0.001953125 : f32
    %32 = vector.broadcast %cst_30 : f32 to vector<1x8xf32>
    %33 = arith.mulf %31, %32 : vector<1x8xf32>
    %34 = arith.mulf %30, %30 : vector<1x8xf32>
    %35 = arith.subf %33, %34 : vector<1x8xf32>
    %cst_31 = arith.constant 9.99999974E-6 : f32
    %36 = vector.broadcast %cst_31 : f32 to vector<1x8xf32>
    %37 = arith.addf %35, %36 : vector<1x8xf32>
    %38 = math.rsqrt %37 : vector<1x8xf32>
    %39 = arith.mulf %38, %21 : vector<1x8xf32>
    %40 = arith.mulf %30, %39 : vector<1x8xf32>
    %41 = arith.subf %22, %40 : vector<1x8xf32>
    %cst_32 = arith.constant dense<0.000000e+00> : vector<1x128xf32>
    %42 = tpu.matmul %39, %1, %cst_32 {dimension_numbers = #tpu.dot_dimension_numbers<[1], [0], [0], [1], [0, 0, 1, 1], [], []>} : vector<1x8xf32>, vector<8x128xf32>, vector<1x128xf32> -> vector<1x128xf32>
    %cst_33 = arith.constant dense<0.000000e+00> : vector<1x128xf32>
    %43 = tpu.matmul %41, %1, %cst_33 {dimension_numbers = #tpu.dot_dimension_numbers<[1], [0], [0], [1], [0, 0, 1, 1], [], []>} : vector<1x8xf32>, vector<8x128xf32>, vector<1x128xf32> -> vector<1x128xf32>
    %44 = vector.broadcast %42 : vector<1x128xf32> to vector<32x128xf32>
    %45 = arith.mulf %19, %44 : vector<32x128xf32>
    %46 = vector.broadcast %43 : vector<1x128xf32> to vector<32x128xf32>
    %47 = arith.addf %45, %46 : vector<32x128xf32>
    %cst_34 = arith.constant 0.000000e+00 : f32
    %48 = vector.broadcast %cst_34 : f32 to vector<32x128xf32>
    %49 = arith.maximumf %47, %48 : vector<32x128xf32>
    %cst_35 = arith.constant 0.000000e+00 : f32
    %50 = vector.broadcast %cst_35 : f32 to vector<2x1x128xf32>
    %c0_36 = arith.constant 0 : index
    %c0_37 = arith.constant 0 : index
    %c0_38 = arith.constant 0 : index
    %51 = vector.load %arg8[%c0_36, %c0_37, %c0_38] : memref<2x18x128xf32, #tpu.memory_space<vmem>>, vector<2x1x128xf32>
    tpu.vector_store %arg8[%c0_36, %c0_37, %c0_38], %50 {strides = array<i32>} : memref<2x18x128xf32, #tpu.memory_space<vmem>>, vector<2x1x128xf32>,
    %c0_39 = arith.constant 0 : index
    %c17 = arith.constant 17 : index
    %c0_40 = arith.constant 0 : index
    %52 = vector.load %arg8[%c0_39, %c17, %c0_40] : memref<2x18x128xf32, #tpu.memory_space<vmem>>, vector<2x1x128xf32>
    tpu.vector_store %arg8[%c0_39, %c17, %c0_40], %50 {strides = array<i32>} : memref<2x18x128xf32, #tpu.memory_space<vmem>>, vector<2x1x128xf32>,
    %53 = vector.shape_cast %49 : vector<32x128xf32> to vector<2x16x128xf32>
    %c0_41 = arith.constant 0 : index
    %c1_42 = arith.constant 1 : index
    %c0_43 = arith.constant 0 : index
    %54 = vector.load %arg8[%c0_41, %c1_42, %c0_43] : memref<2x18x128xf32, #tpu.memory_space<vmem>>, vector<2x16x128xf32>
    tpu.vector_store %arg8[%c0_41, %c1_42, %c0_43], %53 {strides = array<i32>} : memref<2x18x128xf32, #tpu.memory_space<vmem>>, vector<2x16x128xf32>,
    %c0_44 = arith.constant 0 : index
    %c0_45 = arith.constant 0 : index
    %c0_46 = arith.constant 0 : index
    %55 = vector.load %arg8[%c0_44, %c0_45, %c0_46] : memref<2x18x128xf32, #tpu.memory_space<vmem>>, vector<2x16x128xf32>
    %56 = vector.shape_cast %55 : vector<2x16x128xf32> to vector<32x128xf32>
    %57 = arith.truncf %56 : vector<32x128xf32> to vector<32x128xbf16>
    %c0_47 = arith.constant 0 : index
    %c0_48 = arith.constant 0 : index
    %c0_49 = arith.constant 0 : index
    %58 = vector.load %arg3[%c0_47, %c0_48, %c0_49] : memref<3x128x128xbf16, #tpu.memory_space<vmem>>, vector<1x128x128xbf16>
    %59 = vector.shape_cast %58 : vector<1x128x128xbf16> to vector<128x128xbf16>
    %cst_50 = arith.constant dense<0.000000e+00> : vector<32x128xf32>
    %60 = tpu.matmul %57, %59, %cst_50 {dimension_numbers = #tpu.dot_dimension_numbers<[1], [0], [0], [1], [0, 0, 1, 1], [], []>} : vector<32x128xbf16>, vector<128x128xbf16>, vector<32x128xf32> -> vector<32x128xf32>
    %c0_51 = arith.constant 0 : index
    %c1_52 = arith.constant 1 : index
    %c0_53 = arith.constant 0 : index
    %61 = vector.load %arg8[%c0_51, %c1_52, %c0_53] : memref<2x18x128xf32, #tpu.memory_space<vmem>>, vector<2x16x128xf32>
    %62 = vector.shape_cast %61 : vector<2x16x128xf32> to vector<32x128xf32>
    %63 = arith.truncf %62 : vector<32x128xf32> to vector<32x128xbf16>
    %c1_54 = arith.constant 1 : index
    %c0_55 = arith.constant 0 : index
    %c0_56 = arith.constant 0 : index
    %64 = vector.load %arg3[%c1_54, %c0_55, %c0_56] : memref<3x128x128xbf16, #tpu.memory_space<vmem>>, vector<1x128x128xbf16>
    %65 = vector.shape_cast %64 : vector<1x128x128xbf16> to vector<128x128xbf16>
    %cst_57 = arith.constant dense<0.000000e+00> : vector<32x128xf32>
    %66 = tpu.matmul %63, %65, %cst_57 {dimension_numbers = #tpu.dot_dimension_numbers<[1], [0], [0], [1], [0, 0, 1, 1], [], []>} : vector<32x128xbf16>, vector<128x128xbf16>, vector<32x128xf32> -> vector<32x128xf32>
    %67 = arith.addf %60, %66 : vector<32x128xf32>
    %c0_58 = arith.constant 0 : index
    %c2_59 = arith.constant 2 : index
    %c0_60 = arith.constant 0 : index
    %68 = vector.load %arg8[%c0_58, %c2_59, %c0_60] : memref<2x18x128xf32, #tpu.memory_space<vmem>>, vector<2x16x128xf32>
    %69 = vector.shape_cast %68 : vector<2x16x128xf32> to vector<32x128xf32>
    %70 = arith.truncf %69 : vector<32x128xf32> to vector<32x128xbf16>
    %c2_61 = arith.constant 2 : index
    %c0_62 = arith.constant 0 : index
    %c0_63 = arith.constant 0 : index
    %71 = vector.load %arg3[%c2_61, %c0_62, %c0_63] : memref<3x128x128xbf16, #tpu.memory_space<vmem>>, vector<1x128x128xbf16>
    %72 = vector.shape_cast %71 : vector<1x128x128xbf16> to vector<128x128xbf16>
    %cst_64 = arith.constant dense<0.000000e+00> : vector<32x128xf32>
    %73 = tpu.matmul %70, %72, %cst_64 {dimension_numbers = #tpu.dot_dimension_numbers<[1], [0], [0], [1], [0, 0, 1, 1], [], []>} : vector<32x128xbf16>, vector<128x128xbf16>, vector<32x128xf32> -> vector<32x128xf32>
    %74 = arith.addf %67, %73 : vector<32x128xf32>
    %c2_65 = arith.constant 2 : index
    %c0_66 = arith.constant 0 : index
    %75 = vector.load %arg6[%c2_65, %c0_66] : memref<6x8xf32, #tpu.memory_space<vmem>>, vector<1x8xf32>
    %c3 = arith.constant 3 : index
    %c0_67 = arith.constant 0 : index
    %76 = vector.load %arg6[%c3, %c0_67] : memref<6x8xf32, #tpu.memory_space<vmem>>, vector<1x8xf32>
    %cst_68 = arith.constant dense<0.000000e+00> : vector<128xf32>
    %77 = vector.multi_reduction <add>, %74, %cst_68 [0] : vector<32x128xf32> to vector<128xf32>
    %78 = vector.shape_cast %77 : vector<128xf32> to vector<1x128xf32>
    %79 = arith.mulf %74, %74 : vector<32x128xf32>
    %cst_69 = arith.constant dense<0.000000e+00> : vector<128xf32>
    %80 = vector.multi_reduction <add>, %79, %cst_69 [0] : vector<32x128xf32> to vector<128xf32>
    %81 = vector.shape_cast %80 : vector<128xf32> to vector<1x128xf32>
    %cst_70 = arith.constant dense<0.000000e+00> : vector<1x8xf32>
    %82 = tpu.matmul %78, %0, %cst_70 {dimension_numbers = #tpu.dot_dimension_numbers<[1], [0], [0], [1], [0, 0, 1, 1], [], []>} : vector<1x128xf32>, vector<128x8xf32>, vector<1x8xf32> -> vector<1x8xf32>
    %cst_71 = arith.constant 0.001953125 : f32
    %83 = vector.broadcast %cst_71 : f32 to vector<1x8xf32>
    %84 = arith.mulf %82, %83 : vector<1x8xf32>
    %cst_72 = arith.constant dense<0.000000e+00> : vector<1x8xf32>
    %85 = tpu.matmul %81, %0, %cst_72 {dimension_numbers = #tpu.dot_dimension_numbers<[1], [0], [0], [1], [0, 0, 1, 1], [], []>} : vector<1x128xf32>, vector<128x8xf32>, vector<1x8xf32> -> vector<1x8xf32>
    %cst_73 = arith.constant 0.001953125 : f32
    %86 = vector.broadcast %cst_73 : f32 to vector<1x8xf32>
    %87 = arith.mulf %85, %86 : vector<1x8xf32>
    %88 = arith.mulf %84, %84 : vector<1x8xf32>
    %89 = arith.subf %87, %88 : vector<1x8xf32>
    %cst_74 = arith.constant 9.99999974E-6 : f32
    %90 = vector.broadcast %cst_74 : f32 to vector<1x8xf32>
    %91 = arith.addf %89, %90 : vector<1x8xf32>
    %92 = math.rsqrt %91 : vector<1x8xf32>
    %93 = arith.mulf %92, %75 : vector<1x8xf32>
    %94 = arith.mulf %84, %93 : vector<1x8xf32>
    %95 = arith.subf %76, %94 : vector<1x8xf32>
    %cst_75 = arith.constant dense<0.000000e+00> : vector<1x128xf32>
    %96 = tpu.matmul %93, %1, %cst_75 {dimension_numbers = #tpu.dot_dimension_numbers<[1], [0], [0], [1], [0, 0, 1, 1], [], []>} : vector<1x8xf32>, vector<8x128xf32>, vector<1x128xf32> -> vector<1x128xf32>
    %cst_76 = arith.constant dense<0.000000e+00> : vector<1x128xf32>
    %97 = tpu.matmul %95, %1, %cst_76 {dimension_numbers = #tpu.dot_dimension_numbers<[1], [0], [0], [1], [0, 0, 1, 1], [], []>} : vector<1x8xf32>, vector<8x128xf32>, vector<1x128xf32> -> vector<1x128xf32>
    %98 = vector.broadcast %96 : vector<1x128xf32> to vector<32x128xf32>
    %99 = arith.mulf %74, %98 : vector<32x128xf32>
    %100 = vector.broadcast %97 : vector<1x128xf32> to vector<32x128xf32>
    %101 = arith.addf %99, %100 : vector<32x128xf32>
    %c4 = arith.constant 4 : index
    %c0_77 = arith.constant 0 : index
    %102 = vector.load %arg6[%c4, %c0_77] : memref<6x8xf32, #tpu.memory_space<vmem>>, vector<1x8xf32>
    %c5 = arith.constant 5 : index
    %c0_78 = arith.constant 0 : index
    %103 = vector.load %arg6[%c5, %c0_78] : memref<6x8xf32, #tpu.memory_space<vmem>>, vector<1x8xf32>
    %cst_79 = arith.constant dense<0.000000e+00> : vector<128xf32>
    %104 = vector.multi_reduction <add>, %20, %cst_79 [0] : vector<32x128xf32> to vector<128xf32>
    %105 = vector.shape_cast %104 : vector<128xf32> to vector<1x128xf32>
    %106 = arith.mulf %20, %20 : vector<32x128xf32>
    %cst_80 = arith.constant dense<0.000000e+00> : vector<128xf32>
    %107 = vector.multi_reduction <add>, %106, %cst_80 [0] : vector<32x128xf32> to vector<128xf32>
    %108 = vector.shape_cast %107 : vector<128xf32> to vector<1x128xf32>
    %cst_81 = arith.constant dense<0.000000e+00> : vector<1x8xf32>
    %109 = tpu.matmul %105, %0, %cst_81 {dimension_numbers = #tpu.dot_dimension_numbers<[1], [0], [0], [1], [0, 0, 1, 1], [], []>} : vector<1x128xf32>, vector<128x8xf32>, vector<1x8xf32> -> vector<1x8xf32>
    %cst_82 = arith.constant 0.001953125 : f32
    %110 = vector.broadcast %cst_82 : f32 to vector<1x8xf32>
    %111 = arith.mulf %109, %110 : vector<1x8xf32>
    %cst_83 = arith.constant dense<0.000000e+00> : vector<1x8xf32>
    %112 = tpu.matmul %108, %0, %cst_83 {dimension_numbers = #tpu.dot_dimension_numbers<[1], [0], [0], [1], [0, 0, 1, 1], [], []>} : vector<1x128xf32>, vector<128x8xf32>, vector<1x8xf32> -> vector<1x8xf32>
    %cst_84 = arith.constant 0.001953125 : f32
    %113 = vector.broadcast %cst_84 : f32 to vector<1x8xf32>
    %114 = arith.mulf %112, %113 : vector<1x8xf32>
    %115 = arith.mulf %111, %111 : vector<1x8xf32>
    %116 = arith.subf %114, %115 : vector<1x8xf32>
    %cst_85 = arith.constant 9.99999974E-6 : f32
    %117 = vector.broadcast %cst_85 : f32 to vector<1x8xf32>
    %118 = arith.addf %116, %117 : vector<1x8xf32>
    %119 = math.rsqrt %118 : vector<1x8xf32>
    %120 = arith.mulf %119, %102 : vector<1x8xf32>
    %121 = arith.mulf %111, %120 : vector<1x8xf32>
    %122 = arith.subf %103, %121 : vector<1x8xf32>
    %cst_86 = arith.constant dense<0.000000e+00> : vector<1x128xf32>
    %123 = tpu.matmul %120, %1, %cst_86 {dimension_numbers = #tpu.dot_dimension_numbers<[1], [0], [0], [1], [0, 0, 1, 1], [], []>} : vector<1x8xf32>, vector<8x128xf32>, vector<1x128xf32> -> vector<1x128xf32>
    %cst_87 = arith.constant dense<0.000000e+00> : vector<1x128xf32>
    %124 = tpu.matmul %122, %1, %cst_87 {dimension_numbers = #tpu.dot_dimension_numbers<[1], [0], [0], [1], [0, 0, 1, 1], [], []>} : vector<1x8xf32>, vector<8x128xf32>, vector<1x128xf32> -> vector<1x128xf32>
    %125 = vector.broadcast %123 : vector<1x128xf32> to vector<32x128xf32>
    %126 = arith.mulf %20, %125 : vector<32x128xf32>
    %127 = vector.broadcast %124 : vector<1x128xf32> to vector<32x128xf32>
    %128 = arith.addf %126, %127 : vector<32x128xf32>
    %129 = arith.addf %101, %128 : vector<32x128xf32>
    %cst_88 = arith.constant 0.000000e+00 : f32
    %130 = vector.broadcast %cst_88 : f32 to vector<32x128xf32>
    %131 = arith.maximumf %129, %130 : vector<32x128xf32>
    %c0_89 = arith.constant 0 : index
    %c0_90 = arith.constant 0 : index
    %132 = vector.load %arg7[%c0_89, %c0_90] : memref<32x128xf32, #tpu.memory_space<vmem>>, vector<32x128xf32>
    tpu.vector_store %arg7[%c0_89, %c0_90], %131 {strides = array<i32>} : memref<32x128xf32, #tpu.memory_space<vmem>>, vector<32x128xf32>,
    return
  }
  func.func @transform_0(%arg0: i32) -> (i32, i32, i32) {
    %c0_i32 = arith.constant 0 : i32
    %c0_i32_0 = arith.constant 0 : i32
    %c0_i32_1 = arith.constant 0 : i32
    %c0_i32_2 = arith.constant 0 : i32
    return %c0_i32, %c0_i32_0, %c0_i32_1 : i32, i32, i32
  }
  func.func @transform_1(%arg0: i32) -> (i32, i32, i32) {
    %c0_i32 = arith.constant 0 : i32
    %c0_i32_0 = arith.constant 0 : i32
    %c0_i32_1 = arith.constant 0 : i32
    %c0_i32_2 = arith.constant 0 : i32
    return %c0_i32, %c0_i32_0, %c0_i32_1 : i32, i32, i32
  }
  func.func @transform_2(%arg0: i32) -> (i32, i32, i32) {
    %c0_i32 = arith.constant 0 : i32
    %c0_i32_0 = arith.constant 0 : i32
    %c0_i32_1 = arith.constant 0 : i32
    %c0_i32_2 = arith.constant 0 : i32
    return %c0_i32, %c0_i32_0, %c0_i32_1 : i32, i32, i32
  }
  func.func @transform_3(%arg0: i32) -> (i32, i32) {
    %c0_i32 = arith.constant 0 : i32
    %c0_i32_0 = arith.constant 0 : i32
    %c0_i32_1 = arith.constant 0 : i32
    return %c0_i32, %c0_i32_0 : i32, i32
  }
  func.func @transform_4(%arg0: i32) -> (i32, i32) {
    %c0_i32 = arith.constant 0 : i32
    %c0_i32_0 = arith.constant 0 : i32
    %c0_i32_1 = arith.constant 0 : i32
    return %c0_i32, %c0_i32_0 : i32, i32
  }
  func.func @transform_5(%arg0: i32) -> (i32, i32) {
    %c0_i32 = arith.constant 0 : i32
    %c0_i32_0 = arith.constant 0 : i32
    %c0_i32_1 = arith.constant 0 : i32
    return %c0_i32, %c0_i32_0 : i32, i32
  }
  func.func @transform_6(%arg0: i32) -> (i32, i32) {
    %c0_i32 = arith.constant 0 : i32
    %c0_i32_0 = arith.constant 0 : i32
    %c0_i32_1 = arith.constant 0 : i32
    return %c0_i32, %c0_i32_0 : i32, i32
  }
}

</mosaic_0001>

<llo_original>
// kernel: tpu_custom_call.1
$region0: #{tpu_custom_call.1}
  #allocation0 [shape = 'u32[]', space=smem, size = 0x4, offset = 0x4, fixed_abs, tag = 'smem constant byte address 0x4 - core index']
  #allocation1 [shape = 'u32[144,128]{1,0:T(1,128)}', space=vmem, size = 0x12000, scoped, tag = 'internal scratch']
  #allocation2 [shape = 'f32[2,18,128]{2,1,0:T(8,128)}', space=vmem, size = 0x6000, scoped, tag = 'scratch operand']
  %s0 = inlined_call_operand.vmem [shape: bf16[2,18,64], index: 0, kind: input, shape index: {}]
  %s1 = inlined_call_operand.hbm [shape: bf16[3,64,256], index: 1, kind: input, shape index: {}]
  %s2 = inlined_call_operand.hbm [shape: bf16[3,128,128], index: 2, kind: input, shape index: {}]
  %s3 = inlined_call_operand.vmem [shape: f32[128,8], index: 3, kind: input, shape index: {}]
  %s4 = inlined_call_operand.vmem [shape: f32[8,128], index: 4, kind: input, shape index: {}]
  %s5 = inlined_call_operand.vmem [shape: f32[6,8], index: 5, kind: input, shape index: {}]
  %s6 = inlined_call_operand.hbm [shape: f32[32,128], index: 6, kind: output, shape index: {}]
  %s7 = sld [smem:[#allocation0]]
  $region42: #{tpu_custom_call.1} parent=0
    _
  %s9 = ssub.s32 1, %s7
  %s10 = scalar_select 0, %s9, %s7
  $region1: #{tpu_custom_call.1} parent=0
    #allocation3 [shape = 'u8[98304]{0}', space=vmem, size = 0x18000, scoped, tag = 'input window, operand 1, single buffered']
    #allocation4 [shape = 's32[1]{0}', space=sflag, size = 0x4, scoped, tag = 'scoped memory for tpu_custom_call.1']
    #allocation5 [shape = 's32[1]{0}', space=sflag, size = 0x4, scoped, tag = 'scoped memory for tpu_custom_call.1']
    #allocation6 [shape = 'u8[98304]{0}', space=vmem, size = 0x18000, scoped, tag = 'input window, operand 2, single buffered']
    #allocation7 [shape = 's32[1]{0}', space=sflag, size = 0x4, scoped, tag = 'scoped memory for tpu_custom_call.1']
    #allocation8 [shape = 'u8[16384]{0}', space=vmem, size = 0x4000, scoped, tag = 'output window, operand 0, single buffered']
    %11 = vsyncpa [#allocation4], 0
    %12 = vsyncpa [#allocation7], 0
    %13 = vsyncpa [#allocation5], 0
    // Predicated region
    $region2: #{tpu_custom_call.1} parent=1 // pred_check
      _
    $region3: #{tpu_custom_call.1} parent=1 // pred_check_branch
      %15 = sbr.rel (0) target = $region5
    $region4: #{tpu_custom_call.1} parent=1 // pred_region
      _
    $region5: #{tpu_custom_call.1} parent=1 // pred_fallthru
      _
    // Predicated region
    $region6: #{tpu_custom_call.1} parent=1 // pred_check
      _
    $region7: #{tpu_custom_call.1} parent=1 // pred_check_branch
      %17 = sbr.rel (0) target = $region9
    $region8: #{tpu_custom_call.1} parent=1 // pred_region
      %s19 = ssub.s32 3072, 3072
      %20 = vsyncadd [#allocation4], %s19
      %s21 = sshll.u32 [#allocation3], 4
      %s22 = int_to_ptr.vmem [resolvable:$true] %s21
      %27 = dma.hbm_to_vmem [thread:$0]  %s1, 3072, %s22, [#allocation4], 128, 128, 8
    $region9: #{tpu_custom_call.1} parent=1 // pred_fallthru
      _
    // Predicated region
    $region10: #{tpu_custom_call.1} parent=1 // pred_check
      _
    $region11: #{tpu_custom_call.1} parent=1 // pred_check_branch
      %29 = sbr.rel (0) target = $region13
    $region12: #{tpu_custom_call.1} parent=1 // pred_region
      %s31 = ssub.s32 3072, 3072
      %32 = vsyncadd [#allocation7], %s31
      %s33 = sshll.u32 [#allocation6], 4
      %s34 = int_to_ptr.vmem [resolvable:$true] %s33
      %39 = dma.hbm_to_vmem [thread:$0]  %s2, 3072, %s34, [#allocation7], 64, 64, 4
    $region13: #{tpu_custom_call.1} parent=1 // pred_fallthru
      _
    // Predicated region
    $region14: #{tpu_custom_call.1} parent=1 // pred_check
      _
    $region15: #{tpu_custom_call.1} parent=1 // pred_check_branch
      %41 = sbr.rel (0) target = $region17
    $region16: #{tpu_custom_call.1} parent=1 // pred_region
      _
    $region17: #{tpu_custom_call.1} parent=1 // pred_fallthru
      _
    // Predicated region
    $region18: #{tpu_custom_call.1} parent=1 // pred_check
      _
    $region19: #{tpu_custom_call.1} parent=1 // pred_check_branch
      %43 = sbr.rel (0) target = $region21
    $region20: #{tpu_custom_call.1} parent=1 // pred_region
      _
    $region21: #{tpu_custom_call.1} parent=1 // pred_fallthru
      _
    // Predicated region
    $region22: #{tpu_custom_call.1} parent=1 // pred_check
      _
    $region23: #{tpu_custom_call.1} parent=1 // pred_check_branch
      %45 = sbr.rel (0) target = $region25
    $region24: #{tpu_custom_call.1} parent=1 // pred_region
      _
    $region25: #{tpu_custom_call.1} parent=1 // pred_fallthru
      _
    // Predicated region
    $region26: #{tpu_custom_call.1} parent=1 // pred_check
      _
    $region27: #{tpu_custom_call.1} parent=1 // pred_check_branch
      %47 = sbr.rel (0) target = $region29
    $region28: #{tpu_custom_call.1} parent=1 // pred_region
      %48 = dma.done [#allocation4], 3072
    $region29: #{tpu_custom_call.1} parent=1 // pred_fallthru
      _
    // Predicated region
    $region30: #{tpu_custom_call.1} parent=1 // pred_check
      _
    $region31: #{tpu_custom_call.1} parent=1 // pred_check_branch
      %50 = sbr.rel (0) target = $region33
    $region32: #{tpu_custom_call.1} parent=1 // pred_region
      %51 = dma.done [#allocation7], 3072
    $region33: #{tpu_custom_call.1} parent=1 // pred_fallthru
      _
    %v53 = vld [vmem:[%s3] sm:$0xff]
    %v54 = vld [vmem:[%s3 + $0x8] sm:$0xff]
    %v55 = vld [vmem:[%s3 + $0x10] sm:$0xff]
    %v56 = vld [vmem:[%s3 + $0x18] sm:$0xff]
    %v57 = vld [vmem:[%s3 + $0x20] sm:$0xff]
    %v58 = vld [vmem:[%s3 + $0x28] sm:$0xff]
    %v59 = vld [vmem:[%s3 + $0x30] sm:$0xff]
    %v60 = vld [vmem:[%s3 + $0x38] sm:$0xff]
    %v61 = vld [vmem:[%s3 + $0x40] sm:$0xff]
    %v62 = vld [vmem:[%s3 + $0x48] sm:$0xff]
    %v63 = vld [vmem:[%s3 + $0x50] sm:$0xff]
    %v64 = vld [vmem:[%s3 + $0x58] sm:$0xff]
    %v65 = vld [vmem:[%s3 + $0x60] sm:$0xff]
    %v66 = vld [vmem:[%s3 + $0x68] sm:$0xff]
    %v67 = vld [vmem:[%s3 + $0x70] sm:$0xff]
    %v68 = vld [vmem:[%s3 + $0x78] sm:$0xff]
    %v69 = vld [vmem:[%s4] sm:$0xff]
    %v70 = vld [vmem:[%s0] sm:$0xf]
    %v71 = vld [vmem:[%s0 + $0x4] sm:$0xf]
    %v72 = vld [vmem:[%s0 + $0xc] sm:$0xf]
    %v73 = vld [vmem:[%s0 + $0x10] sm:$0xf]
    %v74 = vld [vmem:[#allocation3] sm:$0xff]
    %v75 = vld [vmem:[#allocation3 + $0x8] sm:$0xff]
    %v76 = vld [vmem:[#allocation3 + $0x10] sm:$0xff]
    %v77 = vld [vmem:[#allocation3 + $0x18] sm:$0xff]
    %v78 = vld [vmem:[#allocation3 + $0x20] sm:$0xff]
    %v79 = vld [vmem:[#allocation3 + $0x28] sm:$0xff]
    %v80 = vld [vmem:[#allocation3 + $0x30] sm:$0xff]
    %v81 = vld [vmem:[#allocation3 + $0x38] sm:$0xff]
    %v82 = vld [vmem:[%s0 + $0x8] sm:$0x1]
    %v83 = vld [vmem:[%s0 + $0x14] sm:$0x1]
    %vm84 = vsmask.f32 3328
    %vm85 = vsmask.f32 7440
    %vm86 = vmor %vm84, %vm85
    %v88 = vshrl.u32 %v70, 16
    %v90 = vrot.slane %v88, 4
    %v91 = vshll.u32 %v70, 16
    %v93 = vrot.slane %v91, 5
    %v94 = vor.u32 %v90, %v93
    %v95 = vrot.slane %v94, 4
    %v97 = vshll.u32 %v71, 16
    %v99 = vrot.slane %v97, 5
    %v100 = vsel %vm86, %v95, %v99
    %v101 = vshrl.u32 %v71, 16
    %v103 = vrot.slane %v101, 4
    %v104 = vor.u32 %v103, %v99
    %v105 = vrot.slane %v104, 4
    %v107 = vshll.u32 %v82, 16
    %v109 = vrot.slane %v107, 5
    %v110 = vsel %vm86, %v105, %v109
    %v112 = vshrl.u32 %v72, 16
    %v114 = vrot.slane %v112, 4
    %v115 = vshll.u32 %v72, 16
    %v117 = vrot.slane %v115, 5
    %v118 = vor.u32 %v114, %v117
    %v119 = vrot.slane %v118, 4
    %v121 = vshll.u32 %v73, 16
    %v123 = vrot.slane %v121, 5
    %v124 = vsel %vm86, %v119, %v123
    %v125 = vshrl.u32 %v73, 16
    %v127 = vrot.slane %v125, 4
    %v128 = vor.u32 %v127, %v123
    %v129 = vrot.slane %v128, 4
    %v131 = vshll.u32 %v83, 16
    %v133 = vrot.slane %v131, 5
    %v134 = vsel %vm86, %v129, %v133
    %s135 = scalar_lea.vmem [#allocation3], 64
    %v136 = vld [vmem:[%s135] sm:$0xff]
    %v137 = vld [vmem:[%s135 + $0x8] sm:$0xff]
    %v138 = vld [vmem:[%s135 + $0x10] sm:$0xff]
    %v139 = vld [vmem:[%s135 + $0x18] sm:$0xff]
    %v140 = vld [vmem:[%s135 + $0x20] sm:$0xff]
    %v141 = vld [vmem:[%s135 + $0x28] sm:$0xff]
    %v142 = vld [vmem:[%s135 + $0x30] sm:$0xff]
    %v143 = vld [vmem:[%s135 + $0x38] sm:$0xff]
    %v144 = vunpack.c.l.b16 %v100
    %v145 = vunpack.c.l.b16 %v110
    %v146 = vunpack.c.l.b16 %v124
    %v147 = vunpack.c.l.b16 %v134
    %v148 = vpack.c.b16 %v145, %v144
    %v149 = vpack.c.b16 %v147, %v146
    %v158 = vunpack.c.l.b16 %v136
    %v159 = vunpack.c.h.b16 %v136
    %v160 = vunpack.c.l.b16 %v137
    %v161 = vunpack.c.h.b16 %v137
    %v162 = vunpack.c.l.b16 %v138
    %v163 = vunpack.c.h.b16 %v138
    %v164 = vunpack.c.l.b16 %v139
    %v165 = vunpack.c.h.b16 %v139
    %v166 = vunpack.c.l.b16 %v140
    %v167 = vunpack.c.h.b16 %v140
    %v168 = vunpack.c.l.b16 %v141
    %v169 = vunpack.c.h.b16 %v141
    %v170 = vunpack.c.l.b16 %v142
    %v171 = vunpack.c.h.b16 %v142
    %v172 = vunpack.c.l.b16 %v143
    %v173 = vunpack.c.h.b16 %v143
    %v174 = vpack.c.b16 %v160, %v158
    %v175 = vpack.c.b16 %v161, %v159
    %v176 = vpack.c.b16 %v164, %v162
    %v177 = vpack.c.b16 %v165, %v163
    %v178 = vpack.c.b16 %v168, %v166
    %v179 = vpack.c.b16 %v169, %v167
    %v180 = vpack.c.b16 %v172, %v170
    %v181 = vpack.c.b16 %v173, %v171
    %vm190 = vcmask 523264
    %v192 = vsel %vm190, %v148, 0
    %v195 = vsel %vm190, %v149, 0
    %197 = vmatprep.subr.bf16.mxu0 %v175
    %198 = vmatpush1.bf16.msra.mxu0 %v174
    %199 = vmatprep.subr.bf16.mxu0 %v177
    %200 = vmatpush1.bf16.msra.mxu0 %v176
    %201 = vmatprep.subr.bf16.mxu0 %v179
    %202 = vmatpush1.bf16.msra.mxu0 %v178
    %203 = vmatprep.subr.bf16.mxu0 %v181
    %204 = vmatpush1.bf16.msra.mxu0 %v180
    %205 = vmatprep.subr.bf16.mxu0 0
    %206 = vmatpush1.bf16.msra.mxu0 0
    %207 = vmatprep.subr.bf16.mxu0 0
    %208 = vmatpush1.bf16.msra.mxu0 0
    %209 = vmatprep.subr.bf16.mxu0 0
    %210 = vmatpush1.bf16.msra.mxu0 0
    %211 = vmatprep.subr.bf16.mxu0 0
    %212 = vmatpush1.bf16.msra.mxu0 0
    %213 = vmatprep.subr.bf16.mxu0 0
    %214 = vmatpush1.bf16.msra.mxu0 0
    %215 = vmatprep.subr.bf16.mxu0 0
    %216 = vmatpush1.bf16.msra.mxu0 0
    %217 = vmatprep.subr.bf16.mxu0 0
    %218 = vmatpush1.bf16.msra.mxu0 0
    %219 = vmatprep.subr.bf16.mxu0 0
    %220 = vmatpush1.bf16.msra.mxu0 0
    %221 = vmatprep.subr.bf16.mxu0 0
    %222 = vmatpush1.bf16.msra.mxu0 0
    %223 = vmatprep.subr.bf16.mxu0 0
    %224 = vmatpush1.bf16.msra.mxu0 0
    %225 = vmatprep.subr.bf16.mxu0 0
    %226 = vmatpush1.bf16.msra.mxu0 0
    %227 = vmatprep.subr.bf16.mxu0 0
    %228 = vmatpush1.bf16.msra.mxu0 0
    %229 = vmatprep.mubr.bf16.mxu0 0
    %230 = vmatmul.mubr.bf16.gmra.mrb[0].mxu0 %v192
    %v231 = vpop.f32.mrb[0].mxu0
    %v232 = vadd.f32 0.0, %v231
    %v233 = vpop.f32.mrb[0].mxu0
    %v234 = vadd.f32 0.0, %v233
    %v235 = vpop.f32.mrb[0].mxu0
    %v236 = vadd.f32 0.0, %v235
    %v237 = vpop.f32.mrb[0].mxu0
    %v238 = vadd.f32 0.0, %v237
    %239 = vmatprep.mubr.bf16.mxu0 0
    %240 = vmatmul.mubr.bf16.gmra.mrb[0].mxu0 %v195
    %v241 = vpop.f32.mrb[0].mxu0
    %v242 = vadd.f32 0.0, %v241
    %v243 = vpop.f32.mrb[0].mxu0
    %v244 = vadd.f32 0.0, %v243
    %v245 = vpop.f32.mrb[0].mxu0
    %v246 = vadd.f32 0.0, %v245
    %v247 = vpop.f32.mrb[0].mxu0
    %v248 = vadd.f32 0.0, %v247
    %249 = vdwg.mxu0
    %v254 = vunpack.c.l.b16 %v70
    %v255 = vunpack.c.l.b16 %v71
    %v256 = vunpack.c.l.b16 %v72
    %v257 = vunpack.c.l.b16 %v73
    %v258 = vpack.c.b16 %v255, %v254
    %v259 = vpack.c.b16 %v257, %v256
    %v268 = vunpack.c.l.b16 %v74
    %v269 = vunpack.c.h.b16 %v74
    %v270 = vunpack.c.l.b16 %v75
    %v271 = vunpack.c.h.b16 %v75
    %v272 = vunpack.c.l.b16 %v76
    %v273 = vunpack.c.h.b16 %v76
    %v274 = vunpack.c.l.b16 %v77
    %v275 = vunpack.c.h.b16 %v77
    %v276 = vunpack.c.l.b16 %v78
    %v277 = vunpack.c.h.b16 %v78
    %v278 = vunpack.c.l.b16 %v79
    %v279 = vunpack.c.h.b16 %v79
    %v280 = vunpack.c.l.b16 %v80
    %v281 = vunpack.c.h.b16 %v80
    %v282 = vunpack.c.l.b16 %v81
    %v283 = vunpack.c.h.b16 %v81
    %v284 = vpack.c.b16 %v270, %v268
    %v285 = vpack.c.b16 %v271, %v269
    %v286 = vpack.c.b16 %v274, %v272
    %v287 = vpack.c.b16 %v275, %v273
    %v288 = vpack.c.b16 %v278, %v276
    %v289 = vpack.c.b16 %v279, %v277
    %v290 = vpack.c.b16 %v282, %v280
    %v291 = vpack.c.b16 %v283, %v281
    %v301 = vsel %vm190, %v258, 0
    %v304 = vsel %vm190, %v259, 0
    %306 = vmatprep.subr.bf16.mxu0 %v285
    %307 = vmatpush1.bf16.msra.mxu0 %v284
    %308 = vmatprep.subr.bf16.mxu0 %v287
    %309 = vmatpush1.bf16.msra.mxu0 %v286
    %310 = vmatprep.subr.bf16.mxu0 %v289
    %311 = vmatpush1.bf16.msra.mxu0 %v288
    %312 = vmatprep.subr.bf16.mxu0 %v291
    %313 = vmatpush1.bf16.msra.mxu0 %v290
    %314 = vmatprep.subr.bf16.mxu0 0
    %315 = vmatpush1.bf16.msra.mxu0 0
    %316 = vmatprep.subr.bf16.mxu0 0
    %317 = vmatpush1.bf16.msra.mxu0 0
    %318 = vmatprep.subr.bf16.mxu0 0
    %319 = vmatpush1.bf16.msra.mxu0 0
    %320 = vmatprep.subr.bf16.mxu0 0
    %321 = vmatpush1.bf16.msra.mxu0 0
    %322 = vmatprep.subr.bf16.mxu0 0
    %323 = vmatpush1.bf16.msra.mxu0 0
    %324 = vmatprep.subr.bf16.mxu0 0
    %325 = vmatpush1.bf16.msra.mxu0 0
    %326 = vmatprep.subr.bf16.mxu0 0
    %327 = vmatpush1.bf16.msra.mxu0 0
    %328 = vmatprep.subr.bf16.mxu0 0
    %329 = vmatpush1.bf16.msra.mxu0 0
    %330 = vmatprep.subr.bf16.mxu0 0
    %331 = vmatpush1.bf16.msra.mxu0 0
    %332 = vmatprep.subr.bf16.mxu0 0
    %333 = vmatpush1.bf16.msra.mxu0 0
    %334 = vmatprep.subr.bf16.mxu0 0
    %335 = vmatpush1.bf16.msra.mxu0 0
    %336 = vmatprep.subr.bf16.mxu0 0
    %337 = vmatpush1.bf16.msra.mxu0 0
    %338 = vmatprep.mubr.bf16.mxu0 0
    %339 = vmatmul.mubr.bf16.gmra.mrb[0].mxu0 %v301
    %v340 = vpop.f32.mrb[0].mxu0
    %v341 = vadd.f32 %v232, %v340
    %v342 = vpop.f32.mrb[0].mxu0
    %v343 = vadd.f32 %v234, %v342
    %v344 = vpop.f32.mrb[0].mxu0
    %v345 = vadd.f32 %v236, %v344
    %v346 = vpop.f32.mrb[0].mxu0
    %v347 = vadd.f32 %v238, %v346
    %348 = vmatprep.mubr.bf16.mxu0 0
    %349 = vmatmul.mubr.bf16.gmra.mrb[0].mxu0 %v304
    %v350 = vpop.f32.mrb[0].mxu0
    %v351 = vadd.f32 %v242, %v350
    %v352 = vpop.f32.mrb[0].mxu0
    %v353 = vadd.f32 %v244, %v352
    %v354 = vpop.f32.mrb[0].mxu0
    %v355 = vadd.f32 %v246, %v354
    %v356 = vpop.f32.mrb[0].mxu0
    %v357 = vadd.f32 %v248, %v356
    %358 = vdwg.mxu0
    %v359 = vld [vmem:[%s0] sm:$0xe]
    %v360 = vld [vmem:[%s0 + $0xc] sm:$0xe]
    %vm365 = vcmask 1042432
    %vm366 = vcmask 1046532
    %vm367 = vmor %vm365, %vm366
    %v368 = vrot.slane %v359, 5
    %v369 = vrot.slane %v368, 4
    %v370 = vrot.slane %v71, 5
    %v371 = vsel %vm367, %v369, %v370
    %v372 = vrot.slane %v370, 4
    %v373 = vrot.slane %v82, 5
    %v374 = vsel %vm367, %v372, %v373
    %v375 = vrot.slane %v360, 5
    %v376 = vrot.slane %v375, 4
    %v377 = vrot.slane %v73, 5
    %v378 = vsel %vm367, %v376, %v377
    %v379 = vrot.slane %v377, 4
    %v380 = vrot.slane %v83, 5
    %v381 = vsel %vm367, %v379, %v380
    %s382 = scalar_lea.vmem [#allocation3], 128
    %v383 = vld [vmem:[%s382] sm:$0xff]
    %v384 = vld [vmem:[%s382 + $0x8] sm:$0xff]
    %v385 = vld [vmem:[%s382 + $0x10] sm:$0xff]
    %v386 = vld [vmem:[%s382 + $0x18] sm:$0xff]
    %v387 = vld [vmem:[%s382 + $0x20] sm:$0xff]
    %v388 = vld [vmem:[%s382 + $0x28] sm:$0xff]
    %v389 = vld [vmem:[%s382 + $0x30] sm:$0xff]
    %v390 = vld [vmem:[%s382 + $0x38] sm:$0xff]
    %v391 = vunpack.c.l.b16 %v371
    %v392 = vunpack.c.l.b16 %v374
    %v393 = vunpack.c.l.b16 %v378
    %v394 = vunpack.c.l.b16 %v381
    %v395 = vpack.c.b16 %v392, %v391
    %v396 = vpack.c.b16 %v394, %v393
    %v405 = vunpack.c.l.b16 %v383
    %v406 = vunpack.c.h.b16 %v383
    %v407 = vunpack.c.l.b16 %v384
    %v408 = vunpack.c.h.b16 %v384
    %v409 = vunpack.c.l.b16 %v385
    %v410 = vunpack.c.h.b16 %v385
    %v411 = vunpack.c.l.b16 %v386
    %v412 = vunpack.c.h.b16 %v386
    %v413 = vunpack.c.l.b16 %v387
    %v414 = vunpack.c.h.b16 %v387
    %v415 = vunpack.c.l.b16 %v388
    %v416 = vunpack.c.h.b16 %v388
    %v417 = vunpack.c.l.b16 %v389
    %v418 = vunpack.c.h.b16 %v389
    %v419 = vunpack.c.l.b16 %v390
    %v420 = vunpack.c.h.b16 %v390
    %v421 = vpack.c.b16 %v407, %v405
    %v422 = vpack.c.b16 %v408, %v406
    %v423 = vpack.c.b16 %v411, %v409
    %v424 = vpack.c.b16 %v412, %v410
    %v425 = vpack.c.b16 %v415, %v413
    %v426 = vpack.c.b16 %v416, %v414
    %v427 = vpack.c.b16 %v419, %v417
    %v428 = vpack.c.b16 %v420, %v418
    %v438 = vsel %vm190, %v395, 0
    %v441 = vsel %vm190, %v396, 0
    %443 = vmatprep.subr.bf16.mxu0 %v422
    %444 = vmatpush1.bf16.msra.mxu0 %v421
    %445 = vmatprep.subr.bf16.mxu0 %v424
    %446 = vmatpush1.bf16.msra.mxu0 %v423
    %447 = vmatprep.subr.bf16.mxu0 %v426
    %448 = vmatpush1.bf16.msra.mxu0 %v425
    %449 = vmatprep.subr.bf16.mxu0 %v428
    %450 = vmatpush1.bf16.msra.mxu0 %v427
    %451 = vmatprep.subr.bf16.mxu0 0
    %452 = vmatpush1.bf16.msra.mxu0 0
    %453 = vmatprep.subr.bf16.mxu0 0
    %454 = vmatpush1.bf16.msra.mxu0 0
    %455 = vmatprep.subr.bf16.mxu0 0
    %456 = vmatpush1.bf16.msra.mxu0 0
    %457 = vmatprep.subr.bf16.mxu0 0
    %458 = vmatpush1.bf16.msra.mxu0 0
    %459 = vmatprep.subr.bf16.mxu0 0
    %460 = vmatpush1.bf16.msra.mxu0 0
    %461 = vmatprep.subr.bf16.mxu0 0
    %462 = vmatpush1.bf16.msra.mxu0 0
    %463 = vmatprep.subr.bf16.mxu0 0
    %464 = vmatpush1.bf16.msra.mxu0 0
    %465 = vmatprep.subr.bf16.mxu0 0
    %466 = vmatpush1.bf16.msra.mxu0 0
    %467 = vmatprep.subr.bf16.mxu0 0
    %468 = vmatpush1.bf16.msra.mxu0 0
    %469 = vmatprep.subr.bf16.mxu0 0
    %470 = vmatpush1.bf16.msra.mxu0 0
    %471 = vmatprep.subr.bf16.mxu0 0
    %472 = vmatpush1.bf16.msra.mxu0 0
    %473 = vmatprep.subr.bf16.mxu0 0
    %474 = vmatpush1.bf16.msra.mxu0 0
    %475 = vmatprep.mubr.bf16.mxu0 0
    %476 = vmatmul.mubr.bf16.gmra.mrb[0].mxu0 %v438
    %v477 = vpop.f32.mrb[0].mxu0
    %v478 = vadd.f32 0.0, %v477
    %v479 = vpop.f32.mrb[0].mxu0
    %v480 = vadd.f32 0.0, %v479
    %v481 = vpop.f32.mrb[0].mxu0
    %v482 = vadd.f32 0.0, %v481
    %v483 = vpop.f32.mrb[0].mxu0
    %v484 = vadd.f32 0.0, %v483
    %485 = vmatprep.mubr.bf16.mxu0 0
    %486 = vmatmul.mubr.bf16.gmra.mrb[0].mxu0 %v441
    %v487 = vpop.f32.mrb[0].mxu0
    %v488 = vadd.f32 0.0, %v487
    %v489 = vpop.f32.mrb[0].mxu0
    %v490 = vadd.f32 0.0, %v489
    %v491 = vpop.f32.mrb[0].mxu0
    %v492 = vadd.f32 0.0, %v491
    %v493 = vpop.f32.mrb[0].mxu0
    %v494 = vadd.f32 0.0, %v493
    %495 = vdwg.mxu0
    %v496 = vadd.f32 %v341, %v478
    %v497 = vadd.f32 %v343, %v480
    %v498 = vadd.f32 %v345, %v482
    %v499 = vadd.f32 %v347, %v484
    %v500 = vadd.f32 %v351, %v488
    %v501 = vadd.f32 %v353, %v490
    %v502 = vadd.f32 %v355, %v492
    %v503 = vadd.f32 %v357, %v494
    %v504 = vld [vmem:[%s5] sm:$0x1]
    %v505 = vld [vmem:[%s5 + $0x1] sm:$0x1]
    %v506 = vadd.f32 %v496, %v498
    %v507 = vadd.f32 %v506, %v500
    %v508 = vadd.f32 %v507, %v502
    %v509 = vrot.slane %v508, 4
    %v510 = vadd.f32 %v508, %v509
    %v511 = vrot.slane %v510, 2
    %v512 = vadd.f32 %v510, %v511
    %v513 = vrot.slane %v512, 1
    %v514 = vadd.f32 %v512, %v513
    %v515 = vmul.f32 %v496, %v496
    %v516 = vmul.f32 %v498, %v498
    %v517 = vmul.f32 %v500, %v500
    %v518 = vmul.f32 %v502, %v502
    %v519 = vadd.f32 %v515, %v516
    %v520 = vadd.f32 %v519, %v517
    %v521 = vadd.f32 %v520, %v518
    %v522 = vrot.slane %v521, 4
    %v523 = vadd.f32 %v521, %v522
    %v524 = vrot.slane %v523, 2
    %v525 = vadd.f32 %v523, %v524
    %v526 = vrot.slane %v525, 1
    %v527 = vadd.f32 %v525, %v526
    %528 = vmatprep.subr.mxu0 0.0
    %529 = vmatpush1.msra.mxu0 %v53
    %530 = vmatprep.subr.mxu0 0.0
    %531 = vmatpush1.msra.mxu0 %v54
    %532 = vmatprep.subr.mxu0 0.0
    %533 = vmatpush1.msra.mxu0 %v55
    %534 = vmatprep.subr.mxu0 0.0
    %535 = vmatpush1.msra.mxu0 %v56
    %536 = vmatprep.subr.mxu0 0.0
    %537 = vmatpush1.msra.mxu0 %v57
    %538 = vmatprep.subr.mxu0 0.0
    %539 = vmatpush1.msra.mxu0 %v58
    %540 = vmatprep.subr.mxu0 0.0
    %541 = vmatpush1.msra.mxu0 %v59
    %542 = vmatprep.subr.mxu0 0.0
    %543 = vmatpush1.msra.mxu0 %v60
    %544 = vmatprep.subr.mxu0 0.0
    %545 = vmatpush1.msra.mxu0 %v61
    %546 = vmatprep.subr.mxu0 0.0
    %547 = vmatpush1.msra.mxu0 %v62
    %548 = vmatprep.subr.mxu0 0.0
    %549 = vmatpush1.msra.mxu0 %v63
    %550 = vmatprep.subr.mxu0 0.0
    %551 = vmatpush1.msra.mxu0 %v64
    %552 = vmatprep.subr.mxu0 0.0
    %553 = vmatpush1.msra.mxu0 %v65
    %554 = vmatprep.subr.mxu0 0.0
    %555 = vmatpush1.msra.mxu0 %v66
    %556 = vmatprep.subr.mxu0 0.0
    %557 = vmatpush1.msra.mxu0 %v67
    %558 = vmatprep.subr.mxu0 0.0
    %559 = vmatpush1.msra.mxu0 %v68
    %560 = vmatprep.subr.mxu0 0.0
    %561 = vmatpush1.msra.mxu0 0.0
    %562 = vmatprep.subr.mxu0 0.0
    %563 = vmatpush1.msra.mxu0 0.0
    %564 = vmatprep.subr.mxu0 0.0
    %565 = vmatpush1.msra.mxu0 0.0
    %566 = vmatprep.subr.mxu0 0.0
    %567 = vmatpush1.msra.mxu0 0.0
    %568 = vmatprep.subr.mxu0 0.0
    %569 = vmatpush1.msra.mxu0 0.0
    %570 = vmatprep.subr.mxu0 0.0
    %571 = vmatpush1.msra.mxu0 0.0
    %572 = vmatprep.subr.mxu0 0.0
    %573 = vmatpush1.msra.mxu0 0.0
    %574 = vmatprep.subr.mxu0 0.0
    %575 = vmatpush1.msra.mxu0 0.0
    %576 = vmatprep.subr.mxu0 0.0
    %577 = vmatpush1.msra.mxu0 0.0
    %578 = vmatprep.subr.mxu0 0.0
    %579 = vmatpush1.msra.mxu0 0.0
    %580 = vmatprep.subr.mxu0 0.0
    %581 = vmatpush1.msra.mxu0 0.0
    %582 = vmatprep.subr.mxu0 0.0
    %583 = vmatpush1.msra.mxu0 0.0
    %584 = vmatprep.subr.mxu0 0.0
    %585 = vmatpush1.msra.mxu0 0.0
    %586 = vmatprep.subr.mxu0 0.0
    %587 = vmatpush1.msra.mxu0 0.0
    %588 = vmatprep.subr.mxu0 0.0
    %589 = vmatpush1.msra.mxu0 0.0
    %590 = vmatprep.subr.mxu0 0.0
    %591 = vmatpush1.msra.mxu0 0.0
    %592 = vmatprep.mubr.f32.mxu0 0.0
    %593 = vmatmul.mubr.f32.gmra.mrb[0].mxu0 %v514
    %v594 = vpop.f32.mrb[0].mxu0
    %v595 = vadd.f32 0.0, %v594
    %v596 = vpop.f32.mrb[0].mxu0
    %597 = vdwg.mxu0
    %v598 = vmul.f32 %v595, 0.001953125
    %599 = vmatprep.subr.mxu0 0.0
    %600 = vmatpush1.msra.mxu0 %v53
    %601 = vmatprep.subr.mxu0 0.0
    %602 = vmatpush1.msra.mxu0 %v54
    %603 = vmatprep.subr.mxu0 0.0
    %604 = vmatpush1.msra.mxu0 %v55
    %605 = vmatprep.subr.mxu0 0.0
    %606 = vmatpush1.msra.mxu0 %v56
    %607 = vmatprep.subr.mxu0 0.0
    %608 = vmatpush1.msra.mxu0 %v57
    %609 = vmatprep.subr.mxu0 0.0
    %610 = vmatpush1.msra.mxu0 %v58
    %611 = vmatprep.subr.mxu0 0.0
    %612 = vmatpush1.msra.mxu0 %v59
    %613 = vmatprep.subr.mxu0 0.0
    %614 = vmatpush1.msra.mxu0 %v60
    %615 = vmatprep.subr.mxu0 0.0
    %616 = vmatpush1.msra.mxu0 %v61
    %617 = vmatprep.subr.mxu0 0.0
    %618 = vmatpush1.msra.mxu0 %v62
    %619 = vmatprep.subr.mxu0 0.0
    %620 = vmatpush1.msra.mxu0 %v63
    %621 = vmatprep.subr.mxu0 0.0
    %622 = vmatpush1.msra.mxu0 %v64
    %623 = vmatprep.subr.mxu0 0.0
    %624 = vmatpush1.msra.mxu0 %v65
    %625 = vmatprep.subr.mxu0 0.0
    %626 = vmatpush1.msra.mxu0 %v66
    %627 = vmatprep.subr.mxu0 0.0
    %628 = vmatpush1.msra.mxu0 %v67
    %629 = vmatprep.subr.mxu0 0.0
    %630 = vmatpush1.msra.mxu0 %v68
    %631 = vmatprep.subr.mxu0 0.0
    %632 = vmatpush1.msra.mxu0 0.0
    %633 = vmatprep.subr.mxu0 0.0
    %634 = vmatpush1.msra.mxu0 0.0
    %635 = vmatprep.subr.mxu0 0.0
    %636 = vmatpush1.msra.mxu0 0.0
    %637 = vmatprep.subr.mxu0 0.0
    %638 = vmatpush1.msra.mxu0 0.0
    %639 = vmatprep.subr.mxu0 0.0
    %640 = vmatpush1.msra.mxu0 0.0
    %641 = vmatprep.subr.mxu0 0.0
    %642 = vmatpush1.msra.mxu0 0.0
    %643 = vmatprep.subr.mxu0 0.0
    %644 = vmatpush1.msra.mxu0 0.0
    %645 = vmatprep.subr.mxu0 0.0
    %646 = vmatpush1.msra.mxu0 0.0
    %647 = vmatprep.subr.mxu0 0.0
    %648 = vmatpush1.msra.mxu0 0.0
    %649 = vmatprep.subr.mxu0 0.0
    %650 = vmatpush1.msra.mxu0 0.0
    %651 = vmatprep.subr.mxu0 0.0
    %652 = vmatpush1.msra.mxu0 0.0
    %653 = vmatprep.subr.mxu0 0.0
    %654 = vmatpush1.msra.mxu0 0.0
    %655 = vmatprep.subr.mxu0 0.0
    %656 = vmatpush1.msra.mxu0 0.0
    %657 = vmatprep.subr.mxu0 0.0
    %658 = vmatpush1.msra.mxu0 0.0
    %659 = vmatprep.subr.mxu0 0.0
    %660 = vmatpush1.msra.mxu0 0.0
    %661 = vmatprep.subr.mxu0 0.0
    %662 = vmatpush1.msra.mxu0 0.0
    %663 = vmatprep.mubr.f32.mxu0 0.0
    %664 = vmatmul.mubr.f32.gmra.mrb[0].mxu0 %v527
    %v665 = vpop.f32.mrb[0].mxu0
    %v666 = vadd.f32 0.0, %v665
    %v667 = vpop.f32.mrb[0].mxu0
    %668 = vdwg.mxu0
    %v669 = vmul.f32 %v666, 0.001953125
    %v670 = vmul.f32 %v598, %v598
    %v671 = vsub.f32 %v669, %v670
    %v672 = vadd.f32 %v671, 1e-05
    %v673 = vrsqrt.pop %v672
    %v674 = vmul.f32 %v673, %v504
    %v675 = vmul.f32 %v598, %v674
    %v676 = vsub.f32 %v505, %v675
    %vm677 = vcmask 64512
    %v679 = vsel %vm677, %v674, 0
    %681 = vmatprep.subr.mxu0 0.0
    %682 = vmatpush1.msra.mxu0 %v69
    %683 = vmatprep.subr.mxu0 0.0
    %684 = vmatpush1.msra.mxu0 0.0
    %685 = vmatprep.subr.mxu0 0.0
    %686 = vmatpush1.msra.mxu0 0.0
    %687 = vmatprep.subr.mxu0 0.0
    %688 = vmatpush1.msra.mxu0 0.0
    %689 = vmatprep.subr.mxu0 0.0
    %690 = vmatpush1.msra.mxu0 0.0
    %691 = vmatprep.subr.mxu0 0.0
    %692 = vmatpush1.msra.mxu0 0.0
    %693 = vmatprep.subr.mxu0 0.0
    %694 = vmatpush1.msra.mxu0 0.0
    %695 = vmatprep.subr.mxu0 0.0
    %696 = vmatpush1.msra.mxu0 0.0
    %697 = vmatprep.subr.mxu0 0.0
    %698 = vmatpush1.msra.mxu0 0.0
    %699 = vmatprep.subr.mxu0 0.0
    %700 = vmatpush1.msra.mxu0 0.0
    %701 = vmatprep.subr.mxu0 0.0
    %702 = vmatpush1.msra.mxu0 0.0
    %703 = vmatprep.subr.mxu0 0.0
    %704 = vmatpush1.msra.mxu0 0.0
    %705 = vmatprep.subr.mxu0 0.0
    %706 = vmatpush1.msra.mxu0 0.0
    %707 = vmatprep.subr.mxu0 0.0
    %708 = vmatpush1.msra.mxu0 0.0
    %709 = vmatprep.subr.mxu0 0.0
    %710 = vmatpush1.msra.mxu0 0.0
    %711 = vmatprep.subr.mxu0 0.0
    %712 = vmatpush1.msra.mxu0 0.0
    %713 = vmatprep.subr.mxu0 0.0
    %714 = vmatpush1.msra.mxu0 0.0
    %715 = vmatprep.subr.mxu0 0.0
    %716 = vmatpush1.msra.mxu0 0.0
    %717 = vmatprep.subr.mxu0 0.0
    %718 = vmatpush1.msra.mxu0 0.0
    %719 = vmatprep.subr.mxu0 0.0
    %720 = vmatpush1.msra.mxu0 0.0
    %721 = vmatprep.subr.mxu0 0.0
    %722 = vmatpush1.msra.mxu0 0.0
    %723 = vmatprep.subr.mxu0 0.0
    %724 = vmatpush1.msra.mxu0 0.0
    %725 = vmatprep.subr.mxu0 0.0
    %726 = vmatpush1.msra.mxu0 0.0
    %727 = vmatprep.subr.mxu0 0.0
    %728 = vmatpush1.msra.mxu0 0.0
    %729 = vmatprep.subr.mxu0 0.0
    %730 = vmatpush1.msra.mxu0 0.0
    %731 = vmatprep.subr.mxu0 0.0
    %732 = vmatpush1.msra.mxu0 0.0
    %733 = vmatprep.subr.mxu0 0.0
    %734 = vmatpush1.msra.mxu0 0.0
    %735 = vmatprep.subr.mxu0 0.0
    %736 = vmatpush1.msra.mxu0 0.0
    %737 = vmatprep.subr.mxu0 0.0
    %738 = vmatpush1.msra.mxu0 0.0
    %739 = vmatprep.subr.mxu0 0.0
    %740 = vmatpush1.msra.mxu0 0.0
    %741 = vmatprep.subr.mxu0 0.0
    %742 = vmatpush1.msra.mxu0 0.0
    %743 = vmatprep.subr.mxu0 0.0
    %744 = vmatpush1.msra.mxu0 0.0
    %745 = vmatprep.mubr.f32.mxu0 0.0
    %746 = vmatmul.mubr.f32.gmra.mrb[0].mxu0 %v679
    %v747 = vpop.f32.mrb[0].mxu0
    %v748 = vadd.f32 0.0, %v747
    %v749 = vpop.f32.mrb[0].mxu0
    %750 = vdwg.mxu0
    %v752 = vsel %vm677, %v676, 0
    %754 = vmatprep.subr.mxu0 0.0
    %755 = vmatpush1.msra.mxu0 %v69
    %756 = vmatprep.subr.mxu0 0.0
    %757 = vmatpush1.msra.mxu0 0.0
    %758 = vmatprep.subr.mxu0 0.0
    %759 = vmatpush1.msra.mxu0 0.0
    %760 = vmatprep.subr.mxu0 0.0
    %761 = vmatpush1.msra.mxu0 0.0
    %762 = vmatprep.subr.mxu0 0.0
    %763 = vmatpush1.msra.mxu0 0.0
    %764 = vmatprep.subr.mxu0 0.0
    %765 = vmatpush1.msra.mxu0 0.0
    %766 = vmatprep.subr.mxu0 0.0
    %767 = vmatpush1.msra.mxu0 0.0
    %768 = vmatprep.subr.mxu0 0.0
    %769 = vmatpush1.msra.mxu0 0.0
    %770 = vmatprep.subr.mxu0 0.0
    %771 = vmatpush1.msra.mxu0 0.0
    %772 = vmatprep.subr.mxu0 0.0
    %773 = vmatpush1.msra.mxu0 0.0
    %774 = vmatprep.subr.mxu0 0.0
    %775 = vmatpush1.msra.mxu0 0.0
    %776 = vmatprep.subr.mxu0 0.0
    %777 = vmatpush1.msra.mxu0 0.0
    %778 = vmatprep.subr.mxu0 0.0
    %779 = vmatpush1.msra.mxu0 0.0
    %780 = vmatprep.subr.mxu0 0.0
    %781 = vmatpush1.msra.mxu0 0.0
    %782 = vmatprep.subr.mxu0 0.0
    %783 = vmatpush1.msra.mxu0 0.0
    %784 = vmatprep.subr.mxu0 0.0
    %785 = vmatpush1.msra.mxu0 0.0
    %786 = vmatprep.subr.mxu0 0.0
    %787 = vmatpush1.msra.mxu0 0.0
    %788 = vmatprep.subr.mxu0 0.0
    %789 = vmatpush1.msra.mxu0 0.0
    %790 = vmatprep.subr.mxu0 0.0
    %791 = vmatpush1.msra.mxu0 0.0
    %792 = vmatprep.subr.mxu0 0.0
    %793 = vmatpush1.msra.mxu0 0.0
    %794 = vmatprep.subr.mxu0 0.0
    %795 = vmatpush1.msra.mxu0 0.0
    %796 = vmatprep.subr.mxu0 0.0
    %797 = vmatpush1.msra.mxu0 0.0
    %798 = vmatprep.subr.mxu0 0.0
    %799 = vmatpush1.msra.mxu0 0.0
    %800 = vmatprep.subr.mxu0 0.0
    %801 = vmatpush1.msra.mxu0 0.0
    %802 = vmatprep.subr.mxu0 0.0
    %803 = vmatpush1.msra.mxu0 0.0
    %804 = vmatprep.subr.mxu0 0.0
    %805 = vmatpush1.msra.mxu0 0.0
    %806 = vmatprep.subr.mxu0 0.0
    %807 = vmatpush1.msra.mxu0 0.0
    %808 = vmatprep.subr.mxu0 0.0
    %809 = vmatpush1.msra.mxu0 0.0
    %810 = vmatprep.subr.mxu0 0.0
    %811 = vmatpush1.msra.mxu0 0.0
    %812 = vmatprep.subr.mxu0 0.0
    %813 = vmatpush1.msra.mxu0 0.0
    %814 = vmatprep.subr.mxu0 0.0
    %815 = vmatpush1.msra.mxu0 0.0
    %816 = vmatprep.subr.mxu0 0.0
    %817 = vmatpush1.msra.mxu0 0.0
    %818 = vmatprep.mubr.f32.mxu0 0.0
    %819 = vmatmul.mubr.f32.gmra.mrb[0].mxu0 %v752
    %v820 = vpop.f32.mrb[0].mxu0
    %v821 = vadd.f32 0.0, %v820
    %v822 = vpop.f32.mrb[0].mxu0
    %823 = vdwg.mxu0
    %v824 = vlaneseq
    %v825 = vshrl.u32 %v824, 7
    %v826 = vsub.s32 0, %v825
    %v827 = vrot.slane %v748, %v826
    %v828 = vmul.f32 %v496, %v827
    %v829 = vmul.f32 %v498, %v827
    %v830 = vmul.f32 %v500, %v827
    %v831 = vmul.f32 %v502, %v827
    %v832 = vlaneseq
    %v833 = vshrl.u32 %v832, 7
    %v834 = vsub.s32 0, %v833
    %v835 = vrot.slane %v821, %v834
    %v836 = vadd.f32 %v828, %v835
    %v837 = vadd.f32 %v829, %v835
    %v838 = vadd.f32 %v830, %v835
    %v839 = vadd.f32 %v831, %v835
    %v840 = vmax.f32 %v836, 0.0
    %v841 = vmax.f32 %v837, 0.0
    %v842 = vmax.f32 %v838, 0.0
    %v843 = vmax.f32 %v839, 0.0
    %844 = vst [vmem:[#allocation2] sm:$0x1] 0.0
    %845 = vst [vmem:[#allocation2 + $0x18] sm:$0x1] 0.0
    %846 = vst [vmem:[#allocation2 + $0x11] sm:$0x1] 0.0
    %847 = vst [vmem:[#allocation2 + $0x29] sm:$0x1] 0.0
    %848 = vst [vmem:[#allocation2 + $0x1] sm:$0xff] %v840
    %849 = vst [vmem:[#allocation2 + $0x9] sm:$0xff] %v841
    %850 = vst [vmem:[#allocation2 + $0x19] sm:$0xff] %v842
    %851 = vst [vmem:[#allocation2 + $0x21] sm:$0xff] %v843
    %v852 = vld [vmem:[#allocation2] sm:$0xff]
    %v853 = vld [vmem:[#allocation2 + $0x8] sm:$0xff]
    %v854 = vld [vmem:[#allocation2 + $0x18] sm:$0xff]
    %v855 = vld [vmem:[#allocation2 + $0x20] sm:$0xff]
    %v856 = vpack.c.bf16 %v853, %v852
    %v857 = vpack.c.bf16 %v855, %v854
    %v858 = vld [vmem:[#allocation6] sm:$0xf]
    %v859 = vld [vmem:[#allocation6 + $0x4] sm:$0xf]
    %v860 = vld [vmem:[#allocation6 + $0x8] sm:$0xf]
    %v861 = vld [vmem:[#allocation6 + $0xc] sm:$0xf]
    %v862 = vld [vmem:[#allocation6 + $0x10] sm:$0xf]
    %v863 = vld [vmem:[#allocation6 + $0x14] sm:$0xf]
    %v864 = vld [vmem:[#allocation6 + $0x18] sm:$0xf]
    %v865 = vld [vmem:[#allocation6 + $0x1c] sm:$0xf]
    %v866 = vld [vmem:[#allocation6 + $0x20] sm:$0xf]
    %v867 = vld [vmem:[#allocation6 + $0x24] sm:$0xf]
    %v868 = vld [vmem:[#allocation6 + $0x28] sm:$0xf]
    %v869 = vld [vmem:[#allocation6 + $0x2c] sm:$0xf]
    %v870 = vld [vmem:[#allocation6 + $0x30] sm:$0xf]
    %v871 = vld [vmem:[#allocation6 + $0x34] sm:$0xf]
    %v872 = vld [vmem:[#allocation6 + $0x38] sm:$0xf]
    %v873 = vld [vmem:[#allocation6 + $0x3c] sm:$0xf]
    %v874 = vld [vmem:[#allocation2 + $0x1] sm:$0xff]
    %v875 = vld [vmem:[#allocation2 + $0x9] sm:$0xff]
    %v876 = vld [vmem:[#allocation2 + $0x19] sm:$0xff]
    %v877 = vld [vmem:[#allocation2 + $0x21] sm:$0xff]
    %v878 = vpack.c.bf16 %v875, %v874
    %v879 = vpack.c.bf16 %v877, %v876
    %s880 = scalar_lea.vmem [#allocation6], 64
    %v881 = vld [vmem:[%s880] sm:$0xf]
    %v882 = vld [vmem:[%s880 + $0x4] sm:$0xf]
    %v883 = vld [vmem:[%s880 + $0x8] sm:$0xf]
    %v884 = vld [vmem:[%s880 + $0xc] sm:$0xf]
    %v885 = vld [vmem:[%s880 + $0x10] sm:$0xf]
    %v886 = vld [vmem:[%s880 + $0x14] sm:$0xf]
    %v887 = vld [vmem:[%s880 + $0x18] sm:$0xf]
    %v888 = vld [vmem:[%s880 + $0x1c] sm:$0xf]
    %v889 = vld [vmem:[%s880 + $0x20] sm:$0xf]
    %v890 = vld [vmem:[%s880 + $0x24] sm:$0xf]
    %v891 = vld [vmem:[%s880 + $0x28] sm:$0xf]
    %v892 = vld [vmem:[%s880 + $0x2c] sm:$0xf]
    %v893 = vld [vmem:[%s880 + $0x30] sm:$0xf]
    %v894 = vld [vmem:[%s880 + $0x34] sm:$0xf]
    %v895 = vld [vmem:[%s880 + $0x38] sm:$0xf]
    %v896 = vld [vmem:[%s880 + $0x3c] sm:$0xf]
    %v913 = vunpack.c.l.b16 %v881
    %v914 = vunpack.c.l.b16 %v882
    %v915 = vunpack.c.l.b16 %v883
    %v916 = vunpack.c.l.b16 %v884
    %v917 = vunpack.c.l.b16 %v885
    %v918 = vunpack.c.l.b16 %v886
    %v919 = vunpack.c.l.b16 %v887
    %v920 = vunpack.c.l.b16 %v888
    %v921 = vunpack.c.l.b16 %v889
    %v922 = vunpack.c.l.b16 %v890
    %v923 = vunpack.c.l.b16 %v891
    %v924 = vunpack.c.l.b16 %v892
    %v925 = vunpack.c.l.b16 %v893
    %v926 = vunpack.c.l.b16 %v894
    %v927 = vunpack.c.l.b16 %v895
    %v928 = vunpack.c.l.b16 %v896
    %v929 = vpack.c.b16 %v914, %v913
    %v930 = vpack.c.b16 %v916, %v915
    %v931 = vpack.c.b16 %v918, %v917
    %v932 = vpack.c.b16 %v920, %v919
    %v933 = vpack.c.b16 %v922, %v921
    %v934 = vpack.c.b16 %v924, %v923
    %v935 = vpack.c.b16 %v926, %v925
    %v936 = vpack.c.b16 %v928, %v927
    %945 = vmatprep.subr.bf16.mxu0 0
    %946 = vmatpush1.bf16.msra.mxu0 %v929
    %947 = vmatprep.subr.bf16.mxu0 0
    %948 = vmatpush1.bf16.msra.mxu0 %v930
    %949 = vmatprep.subr.bf16.mxu0 0
    %950 = vmatpush1.bf16.msra.mxu0 %v931
    %951 = vmatprep.subr.bf16.mxu0 0
    %952 = vmatpush1.bf16.msra.mxu0 %v932
    %953 = vmatprep.subr.bf16.mxu0 0
    %954 = vmatpush1.bf16.msra.mxu0 %v933
    %955 = vmatprep.subr.bf16.mxu0 0
    %956 = vmatpush1.bf16.msra.mxu0 %v934
    %957 = vmatprep.subr.bf16.mxu0 0
    %958 = vmatpush1.bf16.msra.mxu0 %v935
    %959 = vmatprep.subr.bf16.mxu0 0
    %960 = vmatpush1.bf16.msra.mxu0 %v936
    %961 = vmatprep.subr.bf16.mxu0 0
    %962 = vmatpush1.bf16.msra.mxu0 0
    %963 = vmatprep.subr.bf16.mxu0 0
    %964 = vmatpush1.bf16.msra.mxu0 0
    %965 = vmatprep.subr.bf16.mxu0 0
    %966 = vmatpush1.bf16.msra.mxu0 0
    %967 = vmatprep.subr.bf16.mxu0 0
    %968 = vmatpush1.bf16.msra.mxu0 0
    %969 = vmatprep.subr.bf16.mxu0 0
    %970 = vmatpush1.bf16.msra.mxu0 0
    %971 = vmatprep.subr.bf16.mxu0 0
    %972 = vmatpush1.bf16.msra.mxu0 0
    %973 = vmatprep.subr.bf16.mxu0 0
    %974 = vmatpush1.bf16.msra.mxu0 0
    %975 = vmatprep.subr.bf16.mxu0 0
    %976 = vmatpush1.bf16.msra.mxu0 0
    %977 = vmatprep.mubr.bf16.mxu0 0
    %978 = vmatmul.mubr.bf16.gmra.mrb[0].mxu0 %v878
    %v979 = vpop.f32.mrb[0].mxu0
    %v980 = vadd.f32 0.0, %v979
    %v981 = vpop.f32.mrb[0].mxu0
    %v982 = vpop.f32.mrb[0].mxu0
    %v983 = vadd.f32 0.0, %v982
    %v984 = vpop.f32.mrb[0].mxu0
    %985 = vmatprep.mubr.bf16.mxu0 0
    %986 = vmatmul.mubr.bf16.gmra.mrb[0].mxu0 %v879
    %v987 = vpop.f32.mrb[0].mxu0
    %v988 = vadd.f32 0.0, %v987
    %v989 = vpop.f32.mrb[0].mxu0
    %v990 = vpop.f32.mrb[0].mxu0
    %v991 = vadd.f32 0.0, %v990
    %v992 = vpop.f32.mrb[0].mxu0
    %993 = vdwg.mxu0
    %v1010 = vunpack.c.l.b16 %v858
    %v1011 = vunpack.c.l.b16 %v859
    %v1012 = vunpack.c.l.b16 %v860
    %v1013 = vunpack.c.l.b16 %v861
    %v1014 = vunpack.c.l.b16 %v862
    %v1015 = vunpack.c.l.b16 %v863
    %v1016 = vunpack.c.l.b16 %v864
    %v1017 = vunpack.c.l.b16 %v865
    %v1018 = vunpack.c.l.b16 %v866
    %v1019 = vunpack.c.l.b16 %v867
    %v1020 = vunpack.c.l.b16 %v868
    %v1021 = vunpack.c.l.b16 %v869
    %v1022 = vunpack.c.l.b16 %v870
    %v1023 = vunpack.c.l.b16 %v871
    %v1024 = vunpack.c.l.b16 %v872
    %v1025 = vunpack.c.l.b16 %v873
    %v1026 = vpack.c.b16 %v1011, %v1010
    %v1027 = vpack.c.b16 %v1013, %v1012
    %v1028 = vpack.c.b16 %v1015, %v1014
    %v1029 = vpack.c.b16 %v1017, %v1016
    %v1030 = vpack.c.b16 %v1019, %v1018
    %v1031 = vpack.c.b16 %v1021, %v1020
    %v1032 = vpack.c.b16 %v1023, %v1022
    %v1033 = vpack.c.b16 %v1025, %v1024
    %1042 = vmatprep.subr.bf16.mxu0 0
    %1043 = vmatpush1.bf16.msra.mxu0 %v1026
    %1044 = vmatprep.subr.bf16.mxu0 0
    %1045 = vmatpush1.bf16.msra.mxu0 %v1027
    %1046 = vmatprep.subr.bf16.mxu0 0
    %1047 = vmatpush1.bf16.msra.mxu0 %v1028
    %1048 = vmatprep.subr.bf16.mxu0 0
    %1049 = vmatpush1.bf16.msra.mxu0 %v1029
    %1050 = vmatprep.subr.bf16.mxu0 0
    %1051 = vmatpush1.bf16.msra.mxu0 %v1030
    %1052 = vmatprep.subr.bf16.mxu0 0
    %1053 = vmatpush1.bf16.msra.mxu0 %v1031
    %1054 = vmatprep.subr.bf16.mxu0 0
    %1055 = vmatpush1.bf16.msra.mxu0 %v1032
    %1056 = vmatprep.subr.bf16.mxu0 0
    %1057 = vmatpush1.bf16.msra.mxu0 %v1033
    %1058 = vmatprep.subr.bf16.mxu0 0
    %1059 = vmatpush1.bf16.msra.mxu0 0
    %1060 = vmatprep.subr.bf16.mxu0 0
    %1061 = vmatpush1.bf16.msra.mxu0 0
    %1062 = vmatprep.subr.bf16.mxu0 0
    %1063 = vmatpush1.bf16.msra.mxu0 0
    %1064 = vmatprep.subr.bf16.mxu0 0
    %1065 = vmatpush1.bf16.msra.mxu0 0
    %1066 = vmatprep.subr.bf16.mxu0 0
    %1067 = vmatpush1.bf16.msra.mxu0 0
    %1068 = vmatprep.subr.bf16.mxu0 0
    %1069 = vmatpush1.bf16.msra.mxu0 0
    %1070 = vmatprep.subr.bf16.mxu0 0
    %1071 = vmatpush1.bf16.msra.mxu0 0
    %1072 = vmatprep.subr.bf16.mxu0 0
    %1073 = vmatpush1.bf16.msra.mxu0 0
    %1074 = vmatprep.mubr.bf16.mxu0 0
    %1075 = vmatmul.mubr.bf16.gmra.mrb[0].mxu0 %v856
    %v1076 = vpop.f32.mrb[0].mxu0
    %v1077 = vadd.f32 %v980, %v1076
    %v1078 = vpop.f32.mrb[0].mxu0
    %v1079 = vpop.f32.mrb[0].mxu0
    %v1080 = vadd.f32 %v983, %v1079
    %v1081 = vpop.f32.mrb[0].mxu0
    %1082 = vmatprep.mubr.bf16.mxu0 0
    %1083 = vmatmul.mubr.bf16.gmra.mrb[0].mxu0 %v857
    %v1084 = vpop.f32.mrb[0].mxu0
    %v1085 = vadd.f32 %v988, %v1084
    %v1086 = vpop.f32.mrb[0].mxu0
    %v1087 = vpop.f32.mrb[0].mxu0
    %v1088 = vadd.f32 %v991, %v1087
    %v1089 = vpop.f32.mrb[0].mxu0
    %1090 = vdwg.mxu0
    %v1091 = vld [vmem:[#allocation2 + $0x2] sm:$0xff]
    %v1092 = vld [vmem:[#allocation2 + $0xa] sm:$0xff]
    %v1093 = vld [vmem:[#allocation2 + $0x1a] sm:$0xff]
    %v1094 = vld [vmem:[#allocation2 + $0x22] sm:$0xff]
    %v1095 = vpack.c.bf16 %v1092, %v1091
    %v1096 = vpack.c.bf16 %v1094, %v1093
    %s1097 = scalar_lea.vmem [#allocation6], 128
    %v1098 = vld [vmem:[%s1097] sm:$0xf]
    %v1099 = vld [vmem:[%s1097 + $0x4] sm:$0xf]
    %v1100 = vld [vmem:[%s1097 + $0x8] sm:$0xf]
    %v1101 = vld [vmem:[%s1097 + $0xc] sm:$0xf]
    %v1102 = vld [vmem:[%s1097 + $0x10] sm:$0xf]
    %v1103 = vld [vmem:[%s1097 + $0x14] sm:$0xf]
    %v1104 = vld [vmem:[%s1097 + $0x18] sm:$0xf]
    %v1105 = vld [vmem:[%s1097 + $0x1c] sm:$0xf]
    %v1106 = vld [vmem:[%s1097 + $0x20] sm:$0xf]
    %v1107 = vld [vmem:[%s1097 + $0x24] sm:$0xf]
    %v1108 = vld [vmem:[%s1097 + $0x28] sm:$0xf]
    %v1109 = vld [vmem:[%s1097 + $0x2c] sm:$0xf]
    %v1110 = vld [vmem:[%s1097 + $0x30] sm:$0xf]
    %v1111 = vld [vmem:[%s1097 + $0x34] sm:$0xf]
    %v1112 = vld [vmem:[%s1097 + $0x38] sm:$0xf]
    %v1113 = vld [vmem:[%s1097 + $0x3c] sm:$0xf]
    %v1130 = vunpack.c.l.b16 %v1098
    %v1131 = vunpack.c.l.b16 %v1099
    %v1132 = vunpack.c.l.b16 %v1100
    %v1133 = vunpack.c.l.b16 %v1101
    %v1134 = vunpack.c.l.b16 %v1102
    %v1135 = vunpack.c.l.b16 %v1103
    %v1136 = vunpack.c.l.b16 %v1104
    %v1137 = vunpack.c.l.b16 %v1105
    %v1138 = vunpack.c.l.b16 %v1106
    %v1139 = vunpack.c.l.b16 %v1107
    %v1140 = vunpack.c.l.b16 %v1108
    %v1141 = vunpack.c.l.b16 %v1109
    %v1142 = vunpack.c.l.b16 %v1110
    %v1143 = vunpack.c.l.b16 %v1111
    %v1144 = vunpack.c.l.b16 %v1112
    %v1145 = vunpack.c.l.b16 %v1113
    %v1146 = vpack.c.b16 %v1131, %v1130
    %v1147 = vpack.c.b16 %v1133, %v1132
    %v1148 = vpack.c.b16 %v1135, %v1134
    %v1149 = vpack.c.b16 %v1137, %v1136
    %v1150 = vpack.c.b16 %v1139, %v1138
    %v1151 = vpack.c.b16 %v1141, %v1140
    %v1152 = vpack.c.b16 %v1143, %v1142
    %v1153 = vpack.c.b16 %v1145, %v1144
    %1162 = vmatprep.subr.bf16.mxu0 0
    %1163 = vmatpush1.bf16.msra.mxu0 %v1146
    %1164 = vmatprep.subr.bf16.mxu0 0
    %1165 = vmatpush1.bf16.msra.mxu0 %v1147
    %1166 = vmatprep.subr.bf16.mxu0 0
    %1167 = vmatpush1.bf16.msra.mxu0 %v1148
    %1168 = vmatprep.subr.bf16.mxu0 0
    %1169 = vmatpush1.bf16.msra.mxu0 %v1149
    %1170 = vmatprep.subr.bf16.mxu0 0
    %1171 = vmatpush1.bf16.msra.mxu0 %v1150
    %1172 = vmatprep.subr.bf16.mxu0 0
    %1173 = vmatpush1.bf16.msra.mxu0 %v1151
    %1174 = vmatprep.subr.bf16.mxu0 0
    %1175 = vmatpush1.bf16.msra.mxu0 %v1152
    %1176 = vmatprep.subr.bf16.mxu0 0
    %1177 = vmatpush1.bf16.msra.mxu0 %v1153
    %1178 = vmatprep.subr.bf16.mxu0 0
    %1179 = vmatpush1.bf16.msra.mxu0 0
    %1180 = vmatprep.subr.bf16.mxu0 0
    %1181 = vmatpush1.bf16.msra.mxu0 0
    %1182 = vmatprep.subr.bf16.mxu0 0
    %1183 = vmatpush1.bf16.msra.mxu0 0
    %1184 = vmatprep.subr.bf16.mxu0 0
    %1185 = vmatpush1.bf16.msra.mxu0 0
    %1186 = vmatprep.subr.bf16.mxu0 0
    %1187 = vmatpush1.bf16.msra.mxu0 0
    %1188 = vmatprep.subr.bf16.mxu0 0
    %1189 = vmatpush1.bf16.msra.mxu0 0
    %1190 = vmatprep.subr.bf16.mxu0 0
    %1191 = vmatpush1.bf16.msra.mxu0 0
    %1192 = vmatprep.subr.bf16.mxu0 0
    %1193 = vmatpush1.bf16.msra.mxu0 0
    %1194 = vmatprep.mubr.bf16.mxu0 0
    %1195 = vmatmul.mubr.bf16.gmra.mrb[0].mxu0 %v1095
    %v1196 = vpop.f32.mrb[0].mxu0
    %v1197 = vadd.f32 0.0, %v1196
    %v1198 = vpop.f32.mrb[0].mxu0
    %v1199 = vpop.f32.mrb[0].mxu0
    %v1200 = vadd.f32 0.0, %v1199
    %v1201 = vpop.f32.mrb[0].mxu0
    %1202 = vmatprep.mubr.bf16.mxu0 0
    %1203 = vmatmul.mubr.bf16.gmra.mrb[0].mxu0 %v1096
    %v1204 = vpop.f32.mrb[0].mxu0
    %v1205 = vadd.f32 0.0, %v1204
    %v1206 = vpop.f32.mrb[0].mxu0
    %v1207 = vpop.f32.mrb[0].mxu0
    %v1208 = vadd.f32 0.0, %v1207
    %v1209 = vpop.f32.mrb[0].mxu0
    %1210 = vdwg.mxu0
    %v1211 = vadd.f32 %v1077, %v1197
    %v1212 = vadd.f32 %v1080, %v1200
    %v1213 = vadd.f32 %v1085, %v1205
    %v1214 = vadd.f32 %v1088, %v1208
    %v1215 = vld [vmem:[%s5 + $0x2] sm:$0x1]
    %v1216 = vld [vmem:[%s5 + $0x3] sm:$0x1]
    %v1217 = vadd.f32 %v1211, %v1212
    %v1218 = vadd.f32 %v1217, %v1213
    %v1219 = vadd.f32 %v1218, %v1214
    %v1220 = vrot.slane %v1219, 4
    %v1221 = vadd.f32 %v1219, %v1220
    %v1222 = vrot.slane %v1221, 2
    %v1223 = vadd.f32 %v1221, %v1222
    %v1224 = vrot.slane %v1223, 1
    %v1225 = vadd.f32 %v1223, %v1224
    %v1226 = vmul.f32 %v1211, %v1211
    %v1227 = vmul.f32 %v1212, %v1212
    %v1228 = vmul.f32 %v1213, %v1213
    %v1229 = vmul.f32 %v1214, %v1214
    %v1230 = vadd.f32 %v1226, %v1227
    %v1231 = vadd.f32 %v1230, %v1228
    %v1232 = vadd.f32 %v1231, %v1229
    %v1233 = vrot.slane %v1232, 4
    %v1234 = vadd.f32 %v1232, %v1233
    %v1235 = vrot.slane %v1234, 2
    %v1236 = vadd.f32 %v1234, %v1235
    %v1237 = vrot.slane %v1236, 1
    %v1238 = vadd.f32 %v1236, %v1237
    %1239 = vmatprep.subr.mxu0 0.0
    %1240 = vmatpush1.msra.mxu0 %v53
    %1241 = vmatprep.subr.mxu0 0.0
    %1242 = vmatpush1.msra.mxu0 %v54
    %1243 = vmatprep.subr.mxu0 0.0
    %1244 = vmatpush1.msra.mxu0 %v55
    %1245 = vmatprep.subr.mxu0 0.0
    %1246 = vmatpush1.msra.mxu0 %v56
    %1247 = vmatprep.subr.mxu0 0.0
    %1248 = vmatpush1.msra.mxu0 %v57
    %1249 = vmatprep.subr.mxu0 0.0
    %1250 = vmatpush1.msra.mxu0 %v58
    %1251 = vmatprep.subr.mxu0 0.0
    %1252 = vmatpush1.msra.mxu0 %v59
    %1253 = vmatprep.subr.mxu0 0.0
    %1254 = vmatpush1.msra.mxu0 %v60
    %1255 = vmatprep.subr.mxu0 0.0
    %1256 = vmatpush1.msra.mxu0 %v61
    %1257 = vmatprep.subr.mxu0 0.0
    %1258 = vmatpush1.msra.mxu0 %v62
    %1259 = vmatprep.subr.mxu0 0.0
    %1260 = vmatpush1.msra.mxu0 %v63
    %1261 = vmatprep.subr.mxu0 0.0
    %1262 = vmatpush1.msra.mxu0 %v64
    %1263 = vmatprep.subr.mxu0 0.0
    %1264 = vmatpush1.msra.mxu0 %v65
    %1265 = vmatprep.subr.mxu0 0.0
    %1266 = vmatpush1.msra.mxu0 %v66
    %1267 = vmatprep.subr.mxu0 0.0
    %1268 = vmatpush1.msra.mxu0 %v67
    %1269 = vmatprep.subr.mxu0 0.0
    %1270 = vmatpush1.msra.mxu0 %v68
    %1271 = vmatprep.subr.mxu0 0.0
    %1272 = vmatpush1.msra.mxu0 0.0
    %1273 = vmatprep.subr.mxu0 0.0
    %1274 = vmatpush1.msra.mxu0 0.0
    %1275 = vmatprep.subr.mxu0 0.0
    %1276 = vmatpush1.msra.mxu0 0.0
    %1277 = vmatprep.subr.mxu0 0.0
    %1278 = vmatpush1.msra.mxu0 0.0
    %1279 = vmatprep.subr.mxu0 0.0
    %1280 = vmatpush1.msra.mxu0 0.0
    %1281 = vmatprep.subr.mxu0 0.0
    %1282 = vmatpush1.msra.mxu0 0.0
    %1283 = vmatprep.subr.mxu0 0.0
    %1284 = vmatpush1.msra.mxu0 0.0
    %1285 = vmatprep.subr.mxu0 0.0
    %1286 = vmatpush1.msra.mxu0 0.0
    %1287 = vmatprep.subr.mxu0 0.0
    %1288 = vmatpush1.msra.mxu0 0.0
    %1289 = vmatprep.subr.mxu0 0.0
    %1290 = vmatpush1.msra.mxu0 0.0
    %1291 = vmatprep.subr.mxu0 0.0
    %1292 = vmatpush1.msra.mxu0 0.0
    %1293 = vmatprep.subr.mxu0 0.0
    %1294 = vmatpush1.msra.mxu0 0.0
    %1295 = vmatprep.subr.mxu0 0.0
    %1296 = vmatpush1.msra.mxu0 0.0
    %1297 = vmatprep.subr.mxu0 0.0
    %1298 = vmatpush1.msra.mxu0 0.0
    %1299 = vmatprep.subr.mxu0 0.0
    %1300 = vmatpush1.msra.mxu0 0.0
    %1301 = vmatprep.subr.mxu0 0.0
    %1302 = vmatpush1.msra.mxu0 0.0
    %1303 = vmatprep.mubr.f32.mxu0 0.0
    %1304 = vmatmul.mubr.f32.gmra.mrb[0].mxu0 %v1225
    %v1305 = vpop.f32.mrb[0].mxu0
    %v1306 = vadd.f32 0.0, %v1305
    %v1307 = vpop.f32.mrb[0].mxu0
    %1308 = vdwg.mxu0
    %v1309 = vmul.f32 %v1306, 0.001953125
    %1310 = vmatprep.subr.mxu0 0.0
    %1311 = vmatpush1.msra.mxu0 %v53
    %1312 = vmatprep.subr.mxu0 0.0
    %1313 = vmatpush1.msra.mxu0 %v54
    %1314 = vmatprep.subr.mxu0 0.0
    %1315 = vmatpush1.msra.mxu0 %v55
    %1316 = vmatprep.subr.mxu0 0.0
    %1317 = vmatpush1.msra.mxu0 %v56
    %1318 = vmatprep.subr.mxu0 0.0
    %1319 = vmatpush1.msra.mxu0 %v57
    %1320 = vmatprep.subr.mxu0 0.0
    %1321 = vmatpush1.msra.mxu0 %v58
    %1322 = vmatprep.subr.mxu0 0.0
    %1323 = vmatpush1.msra.mxu0 %v59
    %1324 = vmatprep.subr.mxu0 0.0
    %1325 = vmatpush1.msra.mxu0 %v60
    %1326 = vmatprep.subr.mxu0 0.0
    %1327 = vmatpush1.msra.mxu0 %v61
    %1328 = vmatprep.subr.mxu0 0.0
    %1329 = vmatpush1.msra.mxu0 %v62
    %1330 = vmatprep.subr.mxu0 0.0
    %1331 = vmatpush1.msra.mxu0 %v63
    %1332 = vmatprep.subr.mxu0 0.0
    %1333 = vmatpush1.msra.mxu0 %v64
    %1334 = vmatprep.subr.mxu0 0.0
    %1335 = vmatpush1.msra.mxu0 %v65
    %1336 = vmatprep.subr.mxu0 0.0
    %1337 = vmatpush1.msra.mxu0 %v66
    %1338 = vmatprep.subr.mxu0 0.0
    %1339 = vmatpush1.msra.mxu0 %v67
    %1340 = vmatprep.subr.mxu0 0.0
    %1341 = vmatpush1.msra.mxu0 %v68
    %1342 = vmatprep.subr.mxu0 0.0
    %1343 = vmatpush1.msra.mxu0 0.0
    %1344 = vmatprep.subr.mxu0 0.0
    %1345 = vmatpush1.msra.mxu0 0.0
    %1346 = vmatprep.subr.mxu0 0.0
    %1347 = vmatpush1.msra.mxu0 0.0
    %1348 = vmatprep.subr.mxu0 0.0
    %1349 = vmatpush1.msra.mxu0 0.0
    %1350 = vmatprep.subr.mxu0 0.0
    %1351 = vmatpush1.msra.mxu0 0.0
    %1352 = vmatprep.subr.mxu0 0.0
    %1353 = vmatpush1.msra.mxu0 0.0
    %1354 = vmatprep.subr.mxu0 0.0
    %1355 = vmatpush1.msra.mxu0 0.0
    %1356 = vmatprep.subr.mxu0 0.0
    %1357 = vmatpush1.msra.mxu0 0.0
    %1358 = vmatprep.subr.mxu0 0.0
    %1359 = vmatpush1.msra.mxu0 0.0
    %1360 = vmatprep.subr.mxu0 0.0
    %1361 = vmatpush1.msra.mxu0 0.0
    %1362 = vmatprep.subr.mxu0 0.0
    %1363 = vmatpush1.msra.mxu0 0.0
    %1364 = vmatprep.subr.mxu0 0.0
    %1365 = vmatpush1.msra.mxu0 0.0
    %1366 = vmatprep.subr.mxu0 0.0
    %1367 = vmatpush1.msra.mxu0 0.0
    %1368 = vmatprep.subr.mxu0 0.0
    %1369 = vmatpush1.msra.mxu0 0.0
    %1370 = vmatprep.subr.mxu0 0.0
    %1371 = vmatpush1.msra.mxu0 0.0
    %1372 = vmatprep.subr.mxu0 0.0
    %1373 = vmatpush1.msra.mxu0 0.0
    %1374 = vmatprep.mubr.f32.mxu0 0.0
    %1375 = vmatmul.mubr.f32.gmra.mrb[0].mxu0 %v1238
    %v1376 = vpop.f32.mrb[0].mxu0
    %v1377 = vadd.f32 0.0, %v1376
    %v1378 = vpop.f32.mrb[0].mxu0
    %1379 = vdwg.mxu0
    %v1380 = vmul.f32 %v1377, 0.001953125
    %v1381 = vmul.f32 %v1309, %v1309
    %v1382 = vsub.f32 %v1380, %v1381
    %v1383 = vadd.f32 %v1382, 1e-05
    %v1384 = vrsqrt.pop %v1383
    %v1385 = vmul.f32 %v1384, %v1215
    %v1386 = vmul.f32 %v1309, %v1385
    %v1387 = vsub.f32 %v1216, %v1386
    %v1389 = vsel %vm677, %v1385, 0
    %1391 = vmatprep.subr.mxu0 0.0
    %1392 = vmatpush1.msra.mxu0 %v69
    %1393 = vmatprep.subr.mxu0 0.0
    %1394 = vmatpush1.msra.mxu0 0.0
    %1395 = vmatprep.subr.mxu0 0.0
    %1396 = vmatpush1.msra.mxu0 0.0
    %1397 = vmatprep.subr.mxu0 0.0
    %1398 = vmatpush1.msra.mxu0 0.0
    %1399 = vmatprep.subr.mxu0 0.0
    %1400 = vmatpush1.msra.mxu0 0.0
    %1401 = vmatprep.subr.mxu0 0.0
    %1402 = vmatpush1.msra.mxu0 0.0
    %1403 = vmatprep.subr.mxu0 0.0
    %1404 = vmatpush1.msra.mxu0 0.0
    %1405 = vmatprep.subr.mxu0 0.0
    %1406 = vmatpush1.msra.mxu0 0.0
    %1407 = vmatprep.subr.mxu0 0.0
    %1408 = vmatpush1.msra.mxu0 0.0
    %1409 = vmatprep.subr.mxu0 0.0
    %1410 = vmatpush1.msra.mxu0 0.0
    %1411 = vmatprep.subr.mxu0 0.0
    %1412 = vmatpush1.msra.mxu0 0.0
    %1413 = vmatprep.subr.mxu0 0.0
    %1414 = vmatpush1.msra.mxu0 0.0
    %1415 = vmatprep.subr.mxu0 0.0
    %1416 = vmatpush1.msra.mxu0 0.0
    %1417 = vmatprep.subr.mxu0 0.0
    %1418 = vmatpush1.msra.mxu0 0.0
    %1419 = vmatprep.subr.mxu0 0.0
    %1420 = vmatpush1.msra.mxu0 0.0
    %1421 = vmatprep.subr.mxu0 0.0
    %1422 = vmatpush1.msra.mxu0 0.0
    %1423 = vmatprep.subr.mxu0 0.0
    %1424 = vmatpush1.msra.mxu0 0.0
    %1425 = vmatprep.subr.mxu0 0.0
    %1426 = vmatpush1.msra.mxu0 0.0
    %1427 = vmatprep.subr.mxu0 0.0
    %1428 = vmatpush1.msra.mxu0 0.0
    %1429 = vmatprep.subr.mxu0 0.0
    %1430 = vmatpush1.msra.mxu0 0.0
    %1431 = vmatprep.subr.mxu0 0.0
    %1432 = vmatpush1.msra.mxu0 0.0
    %1433 = vmatprep.subr.mxu0 0.0
    %1434 = vmatpush1.msra.mxu0 0.0
    %1435 = vmatprep.subr.mxu0 0.0
    %1436 = vmatpush1.msra.mxu0 0.0
    %1437 = vmatprep.subr.mxu0 0.0
    %1438 = vmatpush1.msra.mxu0 0.0
    %1439 = vmatprep.subr.mxu0 0.0
    %1440 = vmatpush1.msra.mxu0 0.0
    %1441 = vmatprep.subr.mxu0 0.0
    %1442 = vmatpush1.msra.mxu0 0.0
    %1443 = vmatprep.subr.mxu0 0.0
    %1444 = vmatpush1.msra.mxu0 0.0
    %1445 = vmatprep.subr.mxu0 0.0
    %1446 = vmatpush1.msra.mxu0 0.0
    %1447 = vmatprep.subr.mxu0 0.0
    %1448 = vmatpush1.msra.mxu0 0.0
    %1449 = vmatprep.subr.mxu0 0.0
    %1450 = vmatpush1.msra.mxu0 0.0
    %1451 = vmatprep.subr.mxu0 0.0
    %1452 = vmatpush1.msra.mxu0 0.0
    %1453 = vmatprep.subr.mxu0 0.0
    %1454 = vmatpush1.msra.mxu0 0.0
    %1455 = vmatprep.mubr.f32.mxu0 0.0
    %1456 = vmatmul.mubr.f32.gmra.mrb[0].mxu0 %v1389
    %v1457 = vpop.f32.mrb[0].mxu0
    %v1458 = vadd.f32 0.0, %v1457
    %v1459 = vpop.f32.mrb[0].mxu0
    %1460 = vdwg.mxu0
    %v1462 = vsel %vm677, %v1387, 0
    %1464 = vmatprep.subr.mxu0 0.0
    %1465 = vmatpush1.msra.mxu0 %v69
    %1466 = vmatprep.subr.mxu0 0.0
    %1467 = vmatpush1.msra.mxu0 0.0
    %1468 = vmatprep.subr.mxu0 0.0
    %1469 = vmatpush1.msra.mxu0 0.0
    %1470 = vmatprep.subr.mxu0 0.0
    %1471 = vmatpush1.msra.mxu0 0.0
    %1472 = vmatprep.subr.mxu0 0.0
    %1473 = vmatpush1.msra.mxu0 0.0
    %1474 = vmatprep.subr.mxu0 0.0
    %1475 = vmatpush1.msra.mxu0 0.0
    %1476 = vmatprep.subr.mxu0 0.0
    %1477 = vmatpush1.msra.mxu0 0.0
    %1478 = vmatprep.subr.mxu0 0.0
    %1479 = vmatpush1.msra.mxu0 0.0
    %1480 = vmatprep.subr.mxu0 0.0
    %1481 = vmatpush1.msra.mxu0 0.0
    %1482 = vmatprep.subr.mxu0 0.0
    %1483 = vmatpush1.msra.mxu0 0.0
    %1484 = vmatprep.subr.mxu0 0.0
    %1485 = vmatpush1.msra.mxu0 0.0
    %1486 = vmatprep.subr.mxu0 0.0
    %1487 = vmatpush1.msra.mxu0 0.0
    %1488 = vmatprep.subr.mxu0 0.0
    %1489 = vmatpush1.msra.mxu0 0.0
    %1490 = vmatprep.subr.mxu0 0.0
    %1491 = vmatpush1.msra.mxu0 0.0
    %1492 = vmatprep.subr.mxu0 0.0
    %1493 = vmatpush1.msra.mxu0 0.0
    %1494 = vmatprep.subr.mxu0 0.0
    %1495 = vmatpush1.msra.mxu0 0.0
    %1496 = vmatprep.subr.mxu0 0.0
    %1497 = vmatpush1.msra.mxu0 0.0
    %1498 = vmatprep.subr.mxu0 0.0
    %1499 = vmatpush1.msra.mxu0 0.0
    %1500 = vmatprep.subr.mxu0 0.0
    %1501 = vmatpush1.msra.mxu0 0.0
    %1502 = vmatprep.subr.mxu0 0.0
    %1503 = vmatpush1.msra.mxu0 0.0
    %1504 = vmatprep.subr.mxu0 0.0
    %1505 = vmatpush1.msra.mxu0 0.0
    %1506 = vmatprep.subr.mxu0 0.0
    %1507 = vmatpush1.msra.mxu0 0.0
    %1508 = vmatprep.subr.mxu0 0.0
    %1509 = vmatpush1.msra.mxu0 0.0
    %1510 = vmatprep.subr.mxu0 0.0
    %1511 = vmatpush1.msra.mxu0 0.0
    %1512 = vmatprep.subr.mxu0 0.0
    %1513 = vmatpush1.msra.mxu0 0.0
    %1514 = vmatprep.subr.mxu0 0.0
    %1515 = vmatpush1.msra.mxu0 0.0
    %1516 = vmatprep.subr.mxu0 0.0
    %1517 = vmatpush1.msra.mxu0 0.0
    %1518 = vmatprep.subr.mxu0 0.0
    %1519 = vmatpush1.msra.mxu0 0.0
    %1520 = vmatprep.subr.mxu0 0.0
    %1521 = vmatpush1.msra.mxu0 0.0
    %1522 = vmatprep.subr.mxu0 0.0
    %1523 = vmatpush1.msra.mxu0 0.0
    %1524 = vmatprep.subr.mxu0 0.0
    %1525 = vmatpush1.msra.mxu0 0.0
    %1526 = vmatprep.subr.mxu0 0.0
    %1527 = vmatpush1.msra.mxu0 0.0
    %1528 = vmatprep.mubr.f32.mxu0 0.0
    %1529 = vmatmul.mubr.f32.gmra.mrb[0].mxu0 %v1462
    %v1530 = vpop.f32.mrb[0].mxu0
    %v1531 = vadd.f32 0.0, %v1530
    %v1532 = vpop.f32.mrb[0].mxu0
    %1533 = vdwg.mxu0
    %v1534 = vlaneseq
    %v1535 = vshrl.u32 %v1534, 7
    %v1536 = vsub.s32 0, %v1535
    %v1537 = vrot.slane %v1458, %v1536
    %v1538 = vmul.f32 %v1211, %v1537
    %v1539 = vmul.f32 %v1212, %v1537
    %v1540 = vmul.f32 %v1213, %v1537
    %v1541 = vmul.f32 %v1214, %v1537
    %v1542 = vlaneseq
    %v1543 = vshrl.u32 %v1542, 7
    %v1544 = vsub.s32 0, %v1543
    %v1545 = vrot.slane %v1531, %v1544
    %v1546 = vadd.f32 %v1538, %v1545
    %v1547 = vadd.f32 %v1539, %v1545
    %v1548 = vadd.f32 %v1540, %v1545
    %v1549 = vadd.f32 %v1541, %v1545
    %v1550 = vld [vmem:[%s5 + $0x4] sm:$0x1]
    %v1551 = vld [vmem:[%s5 + $0x5] sm:$0x1]
    %v1552 = vadd.f32 %v497, %v499
    %v1553 = vadd.f32 %v1552, %v501
    %v1554 = vadd.f32 %v1553, %v503
    %v1555 = vrot.slane %v1554, 4
    %v1556 = vadd.f32 %v1554, %v1555
    %v1557 = vrot.slane %v1556, 2
    %v1558 = vadd.f32 %v1556, %v1557
    %v1559 = vrot.slane %v1558, 1
    %v1560 = vadd.f32 %v1558, %v1559
    %v1561 = vmul.f32 %v497, %v497
    %v1562 = vmul.f32 %v499, %v499
    %v1563 = vmul.f32 %v501, %v501
    %v1564 = vmul.f32 %v503, %v503
    %v1565 = vadd.f32 %v1561, %v1562
    %v1566 = vadd.f32 %v1565, %v1563
    %v1567 = vadd.f32 %v1566, %v1564
    %v1568 = vrot.slane %v1567, 4
    %v1569 = vadd.f32 %v1567, %v1568
    %v1570 = vrot.slane %v1569, 2
    %v1571 = vadd.f32 %v1569, %v1570
    %v1572 = vrot.slane %v1571, 1
    %v1573 = vadd.f32 %v1571, %v1572
    %1574 = vmatprep.subr.mxu0 0.0
    %1575 = vmatpush1.msra.mxu0 %v53
    %1576 = vmatprep.subr.mxu0 0.0
    %1577 = vmatpush1.msra.mxu0 %v54
    %1578 = vmatprep.subr.mxu0 0.0
    %1579 = vmatpush1.msra.mxu0 %v55
    %1580 = vmatprep.subr.mxu0 0.0
    %1581 = vmatpush1.msra.mxu0 %v56
    %1582 = vmatprep.subr.mxu0 0.0
    %1583 = vmatpush1.msra.mxu0 %v57
    %1584 = vmatprep.subr.mxu0 0.0
    %1585 = vmatpush1.msra.mxu0 %v58
    %1586 = vmatprep.subr.mxu0 0.0
    %1587 = vmatpush1.msra.mxu0 %v59
    %1588 = vmatprep.subr.mxu0 0.0
    %1589 = vmatpush1.msra.mxu0 %v60
    %1590 = vmatprep.subr.mxu0 0.0
    %1591 = vmatpush1.msra.mxu0 %v61
    %1592 = vmatprep.subr.mxu0 0.0
    %1593 = vmatpush1.msra.mxu0 %v62
    %1594 = vmatprep.subr.mxu0 0.0
    %1595 = vmatpush1.msra.mxu0 %v63
    %1596 = vmatprep.subr.mxu0 0.0
    %1597 = vmatpush1.msra.mxu0 %v64
    %1598 = vmatprep.subr.mxu0 0.0
    %1599 = vmatpush1.msra.mxu0 %v65
    %1600 = vmatprep.subr.mxu0 0.0
    %1601 = vmatpush1.msra.mxu0 %v66
    %1602 = vmatprep.subr.mxu0 0.0
    %1603 = vmatpush1.msra.mxu0 %v67
    %1604 = vmatprep.subr.mxu0 0.0
    %1605 = vmatpush1.msra.mxu0 %v68
    %1606 = vmatprep.subr.mxu0 0.0
    %1607 = vmatpush1.msra.mxu0 0.0
    %1608 = vmatprep.subr.mxu0 0.0
    %1609 = vmatpush1.msra.mxu0 0.0
    %1610 = vmatprep.subr.mxu0 0.0
    %1611 = vmatpush1.msra.mxu0 0.0
    %1612 = vmatprep.subr.mxu0 0.0
    %1613 = vmatpush1.msra.mxu0 0.0
    %1614 = vmatprep.subr.mxu0 0.0
    %1615 = vmatpush1.msra.mxu0 0.0
    %1616 = vmatprep.subr.mxu0 0.0
    %1617 = vmatpush1.msra.mxu0 0.0
    %1618 = vmatprep.subr.mxu0 0.0
    %1619 = vmatpush1.msra.mxu0 0.0
    %1620 = vmatprep.subr.mxu0 0.0
    %1621 = vmatpush1.msra.mxu0 0.0
    %1622 = vmatprep.subr.mxu0 0.0
    %1623 = vmatpush1.msra.mxu0 0.0
    %1624 = vmatprep.subr.mxu0 0.0
    %1625 = vmatpush1.msra.mxu0 0.0
    %1626 = vmatprep.subr.mxu0 0.0
    %1627 = vmatpush1.msra.mxu0 0.0
    %1628 = vmatprep.subr.mxu0 0.0
    %1629 = vmatpush1.msra.mxu0 0.0
    %1630 = vmatprep.subr.mxu0 0.0
    %1631 = vmatpush1.msra.mxu0 0.0
    %1632 = vmatprep.subr.mxu0 0.0
    %1633 = vmatpush1.msra.mxu0 0.0
    %1634 = vmatprep.subr.mxu0 0.0
    %1635 = vmatpush1.msra.mxu0 0.0
    %1636 = vmatprep.subr.mxu0 0.0
    %1637 = vmatpush1.msra.mxu0 0.0
    %1638 = vmatprep.mubr.f32.mxu0 0.0
    %1639 = vmatmul.mubr.f32.gmra.mrb[0].mxu0 %v1560
    %v1640 = vpop.f32.mrb[0].mxu0
    %v1641 = vadd.f32 0.0, %v1640
    %v1642 = vpop.f32.mrb[0].mxu0
    %1643 = vdwg.mxu0
    %v1644 = vmul.f32 %v1641, 0.001953125
    %1645 = vmatprep.subr.mxu0 0.0
    %1646 = vmatpush1.msra.mxu0 %v53
    %1647 = vmatprep.subr.mxu0 0.0
    %1648 = vmatpush1.msra.mxu0 %v54
    %1649 = vmatprep.subr.mxu0 0.0
    %1650 = vmatpush1.msra.mxu0 %v55
    %1651 = vmatprep.subr.mxu0 0.0
    %1652 = vmatpush1.msra.mxu0 %v56
    %1653 = vmatprep.subr.mxu0 0.0
    %1654 = vmatpush1.msra.mxu0 %v57
    %1655 = vmatprep.subr.mxu0 0.0
    %1656 = vmatpush1.msra.mxu0 %v58
    %1657 = vmatprep.subr.mxu0 0.0
    %1658 = vmatpush1.msra.mxu0 %v59
    %1659 = vmatprep.subr.mxu0 0.0
    %1660 = vmatpush1.msra.mxu0 %v60
    %1661 = vmatprep.subr.mxu0 0.0
    %1662 = vmatpush1.msra.mxu0 %v61
    %1663 = vmatprep.subr.mxu0 0.0
    %1664 = vmatpush1.msra.mxu0 %v62
    %1665 = vmatprep.subr.mxu0 0.0
    %1666 = vmatpush1.msra.mxu0 %v63
    %1667 = vmatprep.subr.mxu0 0.0
    %1668 = vmatpush1.msra.mxu0 %v64
    %1669 = vmatprep.subr.mxu0 0.0
    %1670 = vmatpush1.msra.mxu0 %v65
    %1671 = vmatprep.subr.mxu0 0.0
    %1672 = vmatpush1.msra.mxu0 %v66
    %1673 = vmatprep.subr.mxu0 0.0
    %1674 = vmatpush1.msra.mxu0 %v67
    %1675 = vmatprep.subr.mxu0 0.0
    %1676 = vmatpush1.msra.mxu0 %v68
    %1677 = vmatprep.subr.mxu0 0.0
    %1678 = vmatpush1.msra.mxu0 0.0
    %1679 = vmatprep.subr.mxu0 0.0
    %1680 = vmatpush1.msra.mxu0 0.0
    %1681 = vmatprep.subr.mxu0 0.0
    %1682 = vmatpush1.msra.mxu0 0.0
    %1683 = vmatprep.subr.mxu0 0.0
    %1684 = vmatpush1.msra.mxu0 0.0
    %1685 = vmatprep.subr.mxu0 0.0
    %1686 = vmatpush1.msra.mxu0 0.0
    %1687 = vmatprep.subr.mxu0 0.0
    %1688 = vmatpush1.msra.mxu0 0.0
    %1689 = vmatprep.subr.mxu0 0.0
    %1690 = vmatpush1.msra.mxu0 0.0
    %1691 = vmatprep.subr.mxu0 0.0
    %1692 = vmatpush1.msra.mxu0 0.0
    %1693 = vmatprep.subr.mxu0 0.0
    %1694 = vmatpush1.msra.mxu0 0.0
    %1695 = vmatprep.subr.mxu0 0.0
    %1696 = vmatpush1.msra.mxu0 0.0
    %1697 = vmatprep.subr.mxu0 0.0
    %1698 = vmatpush1.msra.mxu0 0.0
    %1699 = vmatprep.subr.mxu0 0.0
    %1700 = vmatpush1.msra.mxu0 0.0
    %1701 = vmatprep.subr.mxu0 0.0
    %1702 = vmatpush1.msra.mxu0 0.0
    %1703 = vmatprep.subr.mxu0 0.0
    %1704 = vmatpush1.msra.mxu0 0.0
    %1705 = vmatprep.subr.mxu0 0.0
    %1706 = vmatpush1.msra.mxu0 0.0
    %1707 = vmatprep.subr.mxu0 0.0
    %1708 = vmatpush1.msra.mxu0 0.0
    %1709 = vmatprep.mubr.f32.mxu0 0.0
    %1710 = vmatmul.mubr.f32.gmra.mrb[0].mxu0 %v1573
    %v1711 = vpop.f32.mrb[0].mxu0
    %v1712 = vadd.f32 0.0, %v1711
    %v1713 = vpop.f32.mrb[0].mxu0
    %1714 = vdwg.mxu0
    %v1715 = vmul.f32 %v1712, 0.001953125
    %v1716 = vmul.f32 %v1644, %v1644
    %v1717 = vsub.f32 %v1715, %v1716
    %v1718 = vadd.f32 %v1717, 1e-05
    %v1719 = vrsqrt.pop %v1718
    %v1720 = vmul.f32 %v1719, %v1550
    %v1721 = vmul.f32 %v1644, %v1720
    %v1722 = vsub.f32 %v1551, %v1721
    %v1724 = vsel %vm677, %v1720, 0
    %1726 = vmatprep.subr.mxu0 0.0
    %1727 = vmatpush1.msra.mxu0 %v69
    %1728 = vmatprep.subr.mxu0 0.0
    %1729 = vmatpush1.msra.mxu0 0.0
    %1730 = vmatprep.subr.mxu0 0.0
    %1731 = vmatpush1.msra.mxu0 0.0
    %1732 = vmatprep.subr.mxu0 0.0
    %1733 = vmatpush1.msra.mxu0 0.0
    %1734 = vmatprep.subr.mxu0 0.0
    %1735 = vmatpush1.msra.mxu0 0.0
    %1736 = vmatprep.subr.mxu0 0.0
    %1737 = vmatpush1.msra.mxu0 0.0
    %1738 = vmatprep.subr.mxu0 0.0
    %1739 = vmatpush1.msra.mxu0 0.0
    %1740 = vmatprep.subr.mxu0 0.0
    %1741 = vmatpush1.msra.mxu0 0.0
    %1742 = vmatprep.subr.mxu0 0.0
    %1743 = vmatpush1.msra.mxu0 0.0
    %1744 = vmatprep.subr.mxu0 0.0
    %1745 = vmatpush1.msra.mxu0 0.0
    %1746 = vmatprep.subr.mxu0 0.0
    %1747 = vmatpush1.msra.mxu0 0.0
    %1748 = vmatprep.subr.mxu0 0.0
    %1749 = vmatpush1.msra.mxu0 0.0
    %1750 = vmatprep.subr.mxu0 0.0
    %1751 = vmatpush1.msra.mxu0 0.0
    %1752 = vmatprep.subr.mxu0 0.0
    %1753 = vmatpush1.msra.mxu0 0.0
    %1754 = vmatprep.subr.mxu0 0.0
    %1755 = vmatpush1.msra.mxu0 0.0
    %1756 = vmatprep.subr.mxu0 0.0
    %1757 = vmatpush1.msra.mxu0 0.0
    %1758 = vmatprep.subr.mxu0 0.0
    %1759 = vmatpush1.msra.mxu0 0.0
    %1760 = vmatprep.subr.mxu0 0.0
    %1761 = vmatpush1.msra.mxu0 0.0
    %1762 = vmatprep.subr.mxu0 0.0
    %1763 = vmatpush1.msra.mxu0 0.0
    %1764 = vmatprep.subr.mxu0 0.0
    %1765 = vmatpush1.msra.mxu0 0.0
    %1766 = vmatprep.subr.mxu0 0.0
    %1767 = vmatpush1.msra.mxu0 0.0
    %1768 = vmatprep.subr.mxu0 0.0
    %1769 = vmatpush1.msra.mxu0 0.0
    %1770 = vmatprep.subr.mxu0 0.0
    %1771 = vmatpush1.msra.mxu0 0.0
    %1772 = vmatprep.subr.mxu0 0.0
    %1773 = vmatpush1.msra.mxu0 0.0
    %1774 = vmatprep.subr.mxu0 0.0
    %1775 = vmatpush1.msra.mxu0 0.0
    %1776 = vmatprep.subr.mxu0 0.0
    %1777 = vmatpush1.msra.mxu0 0.0
    %1778 = vmatprep.subr.mxu0 0.0
    %1779 = vmatpush1.msra.mxu0 0.0
    %1780 = vmatprep.subr.mxu0 0.0
    %1781 = vmatpush1.msra.mxu0 0.0
    %1782 = vmatprep.subr.mxu0 0.0
    %1783 = vmatpush1.msra.mxu0 0.0
    %1784 = vmatprep.subr.mxu0 0.0
    %1785 = vmatpush1.msra.mxu0 0.0
    %1786 = vmatprep.subr.mxu0 0.0
    %1787 = vmatpush1.msra.mxu0 0.0
    %1788 = vmatprep.subr.mxu0 0.0
    %1789 = vmatpush1.msra.mxu0 0.0
    %1790 = vmatprep.mubr.f32.mxu0 0.0
    %1791 = vmatmul.mubr.f32.gmra.mrb[0].mxu0 %v1724
    %v1792 = vpop.f32.mrb[0].mxu0
    %v1793 = vadd.f32 0.0, %v1792
    %v1794 = vpop.f32.mrb[0].mxu0
    %1795 = vdwg.mxu0
    %v1797 = vsel %vm677, %v1722, 0
    %1799 = vmatprep.subr.mxu0 0.0
    %1800 = vmatpush1.msra.mxu0 %v69
    %1801 = vmatprep.subr.mxu0 0.0
    %1802 = vmatpush1.msra.mxu0 0.0
    %1803 = vmatprep.subr.mxu0 0.0
    %1804 = vmatpush1.msra.mxu0 0.0
    %1805 = vmatprep.subr.mxu0 0.0
    %1806 = vmatpush1.msra.mxu0 0.0
    %1807 = vmatprep.subr.mxu0 0.0
    %1808 = vmatpush1.msra.mxu0 0.0
    %1809 = vmatprep.subr.mxu0 0.0
    %1810 = vmatpush1.msra.mxu0 0.0
    %1811 = vmatprep.subr.mxu0 0.0
    %1812 = vmatpush1.msra.mxu0 0.0
    %1813 = vmatprep.subr.mxu0 0.0
    %1814 = vmatpush1.msra.mxu0 0.0
    %1815 = vmatprep.subr.mxu0 0.0
    %1816 = vmatpush1.msra.mxu0 0.0
    %1817 = vmatprep.subr.mxu0 0.0
    %1818 = vmatpush1.msra.mxu0 0.0
    %1819 = vmatprep.subr.mxu0 0.0
    %1820 = vmatpush1.msra.mxu0 0.0
    %1821 = vmatprep.subr.mxu0 0.0
    %1822 = vmatpush1.msra.mxu0 0.0
    %1823 = vmatprep.subr.mxu0 0.0
    %1824 = vmatpush1.msra.mxu0 0.0
    %1825 = vmatprep.subr.mxu0 0.0
    %1826 = vmatpush1.msra.mxu0 0.0
    %1827 = vmatprep.subr.mxu0 0.0
    %1828 = vmatpush1.msra.mxu0 0.0
    %1829 = vmatprep.subr.mxu0 0.0
    %1830 = vmatpush1.msra.mxu0 0.0
    %1831 = vmatprep.subr.mxu0 0.0
    %1832 = vmatpush1.msra.mxu0 0.0
    %1833 = vmatprep.subr.mxu0 0.0
    %1834 = vmatpush1.msra.mxu0 0.0
    %1835 = vmatprep.subr.mxu0 0.0
    %1836 = vmatpush1.msra.mxu0 0.0
    %1837 = vmatprep.subr.mxu0 0.0
    %1838 = vmatpush1.msra.mxu0 0.0
    %1839 = vmatprep.subr.mxu0 0.0
    %1840 = vmatpush1.msra.mxu0 0.0
    %1841 = vmatprep.subr.mxu0 0.0
    %1842 = vmatpush1.msra.mxu0 0.0
    %1843 = vmatprep.subr.mxu0 0.0
    %1844 = vmatpush1.msra.mxu0 0.0
    %1845 = vmatprep.subr.mxu0 0.0
    %1846 = vmatpush1.msra.mxu0 0.0
    %1847 = vmatprep.subr.mxu0 0.0
    %1848 = vmatpush1.msra.mxu0 0.0
    %1849 = vmatprep.subr.mxu0 0.0
    %1850 = vmatpush1.msra.mxu0 0.0
    %1851 = vmatprep.subr.mxu0 0.0
    %1852 = vmatpush1.msra.mxu0 0.0
    %1853 = vmatprep.subr.mxu0 0.0
    %1854 = vmatpush1.msra.mxu0 0.0
    %1855 = vmatprep.subr.mxu0 0.0
    %1856 = vmatpush1.msra.mxu0 0.0
    %1857 = vmatprep.subr.mxu0 0.0
    %1858 = vmatpush1.msra.mxu0 0.0
    %1859 = vmatprep.subr.mxu0 0.0
    %1860 = vmatpush1.msra.mxu0 0.0
    %1861 = vmatprep.subr.mxu0 0.0
    %1862 = vmatpush1.msra.mxu0 0.0
    %1863 = vmatprep.mubr.f32.mxu0 0.0
    %1864 = vmatmul.mubr.f32.gmra.mrb[0].mxu0 %v1797
    %v1865 = vpop.f32.mrb[0].mxu0
    %v1866 = vadd.f32 0.0, %v1865
    %v1867 = vpop.f32.mrb[0].mxu0
    %1868 = vdwg.mxu0
    %v1869 = vlaneseq
    %v1870 = vshrl.u32 %v1869, 7
    %v1871 = vsub.s32 0, %v1870
    %v1872 = vrot.slane %v1793, %v1871
    %v1873 = vmul.f32 %v497, %v1872
    %v1874 = vmul.f32 %v499, %v1872
    %v1875 = vmul.f32 %v501, %v1872
    %v1876 = vmul.f32 %v503, %v1872
    %v1877 = vlaneseq
    %v1878 = vshrl.u32 %v1877, 7
    %v1879 = vsub.s32 0, %v1878
    %v1880 = vrot.slane %v1866, %v1879
    %v1881 = vadd.f32 %v1873, %v1880
    %v1882 = vadd.f32 %v1874, %v1880
    %v1883 = vadd.f32 %v1875, %v1880
    %v1884 = vadd.f32 %v1876, %v1880
    %v1885 = vadd.f32 %v1546, %v1881
    %v1886 = vadd.f32 %v1547, %v1882
    %v1887 = vadd.f32 %v1548, %v1883
    %v1888 = vadd.f32 %v1549, %v1884
    %v1889 = vmax.f32 %v1885, 0.0
    %v1890 = vmax.f32 %v1886, 0.0
    %v1891 = vmax.f32 %v1887, 0.0
    %v1892 = vmax.f32 %v1888, 0.0
    %1893 = vst [vmem:[#allocation8] sm:$0xff] %v1889
    %1894 = vst [vmem:[#allocation8 + $0x8] sm:$0xff] %v1890
    %1895 = vst [vmem:[#allocation8 + $0x10] sm:$0xff] %v1891
    %1896 = vst [vmem:[#allocation8 + $0x18] sm:$0xff] %v1892
    // Predicated region
    $region34: #{tpu_custom_call.1} parent=1 // pred_check
      _
    $region35: #{tpu_custom_call.1} parent=1 // pred_check_branch
      %1898 = sbr.rel (0) target = $region37
    $region36: #{tpu_custom_call.1} parent=1 // pred_region
      %s1900 = ssub.s32 512, 512
      %1901 = vsyncadd [#allocation5], %s1900
      %s1902 = sshll.u32 [#allocation8], 4
      %s1903 = int_to_ptr.vmem [resolvable:$true] %s1902
      %1908 = dma.vmem_to_hbm [thread:$0]  %s1903, 512, %s6, [#allocation5], 128, 128, 8
    $region37: #{tpu_custom_call.1} parent=1 // pred_fallthru
      _
    // Predicated region
    $region38: #{tpu_custom_call.1} parent=1 // pred_check
      _
    $region39: #{tpu_custom_call.1} parent=1 // pred_check_branch
      %1910 = sbr.rel (0) target = $region41
    $region40: #{tpu_custom_call.1} parent=1 // pred_region
      %1911 = dma.done [#allocation5], 512
    $region41: #{tpu_custom_call.1} parent=1 // pred_fallthru
      _
    %1912 = vsyncpa [#allocation4], 1
    %1913 = vsyncpa [#allocation7], 1
    %1914 = vsyncpa [#allocation5], 1

</llo_original>
